<compile_context>
chip_gen: v5e
topology: v5e:2x2
jax: 0.10.0
libtpu: 0.0.40
codegen_flags: <defaults>
</compile_context>

<pallas_src>
import functools
import numpy as np
import jax
import jax.numpy as jnp
from jax.experimental import pallas as pl
from jax.experimental.pallas import tpu as pltpu


def _round_up(x, m):
    return ((x + m - 1) // m) * m


def _pick_row_tile(n_rows, row_tile):
    """Rows per grid step: multiple of 8; >= 2 grid steps when N allows (v7x has
    two TensorCores); multiple of 128 on the large-N path so the lane-dense
    pred-feature tile transposes on (8,128)-friendly shapes."""
    if n_rows <= 128:
        return _round_up(n_rows, 8)
    tn = min(row_tile, pl.cdiv(n_rows, 2))
    return _round_up(tn, 128)


def _box_feature_rows(boxes_cxcywh):
    """[M, 4] cxcywh -> [9, M] feature rows (cx, cy, w, h, x0, y0, x1, y1, area)."""
    cx, cy, w, h = (boxes_cxcywh[:, 0], boxes_cxcywh[:, 1],
                    boxes_cxcywh[:, 2], boxes_cxcywh[:, 3])
    x0 = cx - 0.5 * w
    y0 = cy - 0.5 * h
    x1 = cx + 0.5 * w
    y1 = cy + 0.5 * h
    return jnp.stack([cx, cy, w, h, x0, y0, x1, y1, w * h], axis=0)


def _cost_kernel(cost_bbox_w, cost_giou_w,
                 logits_ref, pred_feat_ref, onehot_t_ref, tgt_feat_ref,
                 cost_ref):
    # ---- classification cost: -w_class * softmax(logits)[:, tgt_ids]
    # (the gather is an MXU matmul against a [-w_class]-scaled one-hot matrix).
    logits = logits_ref[...].astype(jnp.float32)                  # [TN, C]
    m = jnp.max(logits, axis=-1, keepdims=True)
    e = jnp.exp(logits - m)
    prob = e / jnp.sum(e, axis=-1, keepdims=True)                 # exact divide ([TN,1] denom)
    cost = jnp.dot(prob, onehot_t_ref[...],
                   preferred_element_type=jnp.float32)            # [TN, T_pad]

    # ---- box features: pred features arrive lane-dense as [16, TN]; one small
    # XLU transpose per tile gives the [TN, 1]-sliceable orientation (the XLU
    # slot is otherwise idle in this kernel).
    pf = jnp.transpose(pred_feat_ref[...].astype(jnp.float32))    # [TN, 16]
    tf = tgt_feat_ref[...].astype(jnp.float32)                    # [16, T_pad]

    pcx, pcy, pw, ph = pf[:, 0:1], pf[:, 1:2], pf[:, 2:3], pf[:, 3:4]
    px0, py0, px1, py1 = pf[:, 4:5], pf[:, 5:6], pf[:, 6:7], pf[:, 7:8]
    parea = pf[:, 8:9]
    tcx, tcy, tw, th = tf[0:1, :], tf[1:2, :], tf[2:3, :], tf[3:4, :]
    tx0, ty0, tx1, ty1 = tf[4:5, :], tf[5:6, :], tf[6:7, :], tf[7:8, :]
    tarea = tf[8:9, :]

    # ---- L1 bbox cost (torch.cdist p=1 on cxcywh)
    cost += cost_bbox_w * (jnp.abs(pcx - tcx) + jnp.abs(pcy - tcy)
                           + jnp.abs(pw - tw) + jnp.abs(ph - th))

    # ---- generalized IoU cost (exact divides; clamps kept to match torch
    # generalized_box_iou on degenerate boxes).
    iw = jnp.maximum(jnp.minimum(px1, tx1) - jnp.maximum(px0, tx0), 0.0)
    ih = jnp.maximum(jnp.minimum(py1, ty1) - jnp.maximum(py0, ty0), 0.0)
    inter = iw * ih                                               # [TN, T_pad]
    union = parea + tarea - inter
    iou = inter / union
    ew = jnp.maximum(jnp.maximum(px1, tx1) - jnp.minimum(px0, tx0), 0.0)
    eh = jnp.maximum(jnp.maximum(py1, ty1) - jnp.minimum(py0, ty0), 0.0)
    earea = ew * eh
    giou = iou - (earea - union) / earea

    cost_ref[...] = (cost - cost_giou_w * giou).astype(cost_ref.dtype)


def hungarian_cost_matrix(pred_logits, pred_boxes, tgt_ids, tgt_boxes,
                          cost_class=1.0, cost_bbox=1.0, cost_giou=1.0,
                          row_tile=1024):
    """Matching cost matrix, shape [B, Q, T_pad] (targets padded to 128 lanes).
    Only [..., :num_targets] is meaningful; the lane slice is left to the
    consumer (the host-side linear_sum_assignment) to avoid an extra on-device
    read+write of the cost matrix."""
    B, Q, C = pred_logits.shape
    N = B * Q
    T = int(tgt_boxes.shape[0])
    T_pad = _round_up(max(T, 1), 128)

    TN = _pick_row_tile(N, row_tile)
    G = pl.cdiv(N, TN)

    # Big tensor: logits go in untouched (no pad, no copy). The ragged last row
    # tile is handled by the cdiv grid; all reductions are per-row so garbage in
    # masked rows never leaks into valid rows.
    logits = pred_logits.reshape(N, C)

    # Small tensors (a few KiB): built / padded in the wrapper.
    boxes = pred_boxes.reshape(N, 4).astype(jnp.float32)
    if G * TN > N:
        dummy = jnp.tile(jnp.array([[0.5, 0.5, 1.0, 1.0]], jnp.float32),
                         (G * TN - N, 1))
        boxes = jnp.concatenate([boxes, dummy], axis=0)
    pred_feat = _box_feature_rows(boxes)                          # [9, G*TN]
    pred_feat = jnp.pad(pred_feat, ((0, 7), (0, 0)))              # [16, G*TN]
    pred_feat = pred_feat.reshape(16, G, TN).transpose(1, 0, 2)   # [G, 16, TN]

    tb = tgt_boxes.astype(jnp.float32)
    if T_pad > T:
        dummy = jnp.tile(jnp.array([[0.5, 0.5, 1.0, 1.0]], jnp.float32),
                         (T_pad - T, 1))
        tb = jnp.concatenate([tb, dummy], axis=0)
    tgt_feat = jnp.pad(_box_feature_rows(tb), ((0, 7), (0, 0)))   # [16, T_pad]

    onehot_t = (-float(cost_class)) * jax.nn.one_hot(tgt_ids, C, dtype=jnp.float32).T
    onehot_t = jnp.pad(onehot_t, ((0, 0), (0, T_pad - T)))        # [C, T_pad]

    kernel = functools.partial(_cost_kernel, float(cost_bbox), float(cost_giou))
    cost = pl.pallas_call(
        kernel,
        out_shape=jax.ShapeDtypeStruct((N, T_pad), jnp.float32),
        grid=(G,),
        in_specs=[
            pl.BlockSpec((TN, C), lambda i: (i, 0)),              # row-tiled logits
            pl.BlockSpec((None, 16, TN), lambda i: (i, 0, 0)),    # lane-dense pred feats
            pl.BlockSpec((C, T_pad), lambda i: (0, 0)),           # resident across tiles
            pl.BlockSpec((16, T_pad), lambda i: (0, 0)),          # resident across tiles
        ],
        out_specs=pl.BlockSpec((TN, T_pad), lambda i: (i, 0)),
        compiler_params=pltpu.CompilerParams(
            dimension_semantics=("parallel",),                    # megacore on v7x
            vmem_limit_bytes=32 * 1024 * 1024,                    # fits v5e/v6e/v7x
        ),
    )(logits, pred_feat, onehot_t, tgt_feat)
    return cost.reshape(B, Q, T_pad)                              # free (contiguous) reshape


def _reference_cost(pred_logits, pred_boxes, tgt_ids, tgt_boxes, cc=1.0, cb=1.0, cg=1.0):
    """Pure-numpy reference replicating the PyTorch forward (up to the LSA call)."""
    B, Q, C = pred_logits.shape
    logits = np.asarray(pred_logits, np.float32).reshape(-1, C)
    prob = np.exp(logits - logits.max(-1, keepdims=True))
    prob = prob / prob.sum(-1, keepdims=True)
    ob = np.asarray(pred_boxes, np.float32).reshape(-1, 4)
    tb = np.asarray(tgt_boxes, np.float32)
    ids = np.asarray(tgt_ids)

    cost_class = -prob[:, ids]
    cost_bbox = np.abs(ob[:, None, :] - tb[None, :, :]).sum(-1)

    def to_xyxy(b):
        return np.stack([b[:, 0] - 0.5 * b[:, 2], b[:, 1] - 0.5 * b[:, 3],
                         b[:, 0] + 0.5 * b[:, 2], b[:, 1] + 0.5 * b[:, 3]], axis=1)

    b1, b2 = to_xyxy(ob), to_xyxy(tb)
    area1 = (b1[:, 2] - b1[:, 0]) * (b1[:, 3] - b1[:, 1])
    area2 = (b2[:, 2] - b2[:, 0]) * (b2[:, 3] - b2[:, 1])
    lt = np.maximum(b1[:, None, :2], b2[None, :, :2])
    rb = np.minimum(b1[:, None, 2:], b2[None, :, 2:])
    wh = np.clip(rb - lt, 0, None)
    inter = wh[:, :, 0] * wh[:, :, 1]
    union = area1[:, None] + area2[None, :] - inter
    iou = inter / union
    lt2 = np.minimum(b1[:, None, :2], b2[None, :, :2])
    rb2 = np.maximum(b1[:, None, 2:], b2[None, :, 2:])
    wh2 = np.clip(rb2 - lt2, 0, None)
    area = wh2[:, :, 0] * wh2[:, :, 1]
    giou = iou - (area - union) / area
    return (cb * cost_bbox + cc * cost_class + cg * (-giou)).reshape(B, Q, -1)


if __name__ == "__main__":
    key = jax.random.PRNGKey(0)
    B, Q, C = 2, 100, 16        # DETR uses num_queries=100; small class count for the test
    sizes = [3, 5]              # num_target_boxes per batch element
    T = sum(sizes)

    k1, k2, k3, k4 = jax.random.split(key, 4)
    pred_logits = jax.random.normal(k1, (B, Q, C), jnp.float32)
    pred_boxes = jax.nn.sigmoid(jax.random.normal(k2, (B, Q, 4), jnp.float32))   # cxcywh in (0,1)
    tgt_ids = jax.random.randint(k3, (T,), 0, C, dtype=jnp.int32)
    tgt_boxes = jax.nn.sigmoid(jax.random.normal(k4, (T, 4), jnp.float32))

    # N=200 -> TN=128, grid=(2,): exercises the pipelined path + the masked ragged tail.
    cost_pad = hungarian_cost_matrix(pred_logits, pred_boxes, tgt_ids, tgt_boxes,
                                     cost_class=1.0, cost_bbox=1.0, cost_giou=1.0)
    cost_pad = jax.block_until_ready(cost_pad)

    # The cost matrix goes to host scipy anyway; slice the padded lanes on the host copy.
    cost_np = np.asarray(cost_pad)[:, :, :T]

    ref = _reference_cost(pred_logits, pred_boxes, tgt_ids, tgt_boxes)
    assert np.allclose(cost_np, ref, rtol=1e-3, atol=1e-3), "cost matrix mismatch"

    # TODO(synk): linear_sum_assignment (Hungarian solve) is a sequential host-side
    # combinatorial algorithm with no Pallas equivalent; run it on host if scipy exists.
    try:
        from scipy.optimize import linear_sum_assignment
        splits = np.split(cost_np, np.cumsum(sizes)[:-1], axis=-1)
        indices = [linear_sum_assignment(c[i]) for i, c in enumerate(splits)]
        _ = [(np.asarray(i, np.int64), np.asarray(j, np.int64)) for i, j in indices]
    except ImportError:
        pass

    print("KERNEL_OK")
</pallas_src>

<mosaic_0001>
module attributes {stable_mosaic.version = 11 : i64} {
  func.func @_cost_kernel(%arg0: i32, %arg1: memref<128x16xf32, #tpu.memory_space<vmem>>, %arg2: memref<1x16x128xf32, #tpu.memory_space<vmem>>, %arg3: memref<16x128xf32, #tpu.memory_space<vmem>>, %arg4: memref<16x128xf32, #tpu.memory_space<vmem>>, %arg5: memref<128x128xf32, #tpu.memory_space<vmem>>) attributes {dimension_semantics = [#tpu.dimension_semantics<parallel>], iteration_bounds = array<i64: 2>, scalar_prefetch = 0 : i64, scratch_operands = 0 : i64, tpu.core_type = #tpu.core_type<tc>, window_params = [{transform_indices = @transform_0, window_bounds = array<i64: 128, 16>}, {transform_indices = @transform_1, window_bounds = array<i64: 1, 16, 128>}, {pipeline_mode = #tpu.pipeline_mode<synchronous>, transform_indices = @transform_2, window_bounds = array<i64: 16, 128>}, {pipeline_mode = #tpu.pipeline_mode<synchronous>, transform_indices = @transform_3, window_bounds = array<i64: 16, 128>}, {transform_indices = @transform_4, window_bounds = array<i64: 128, 128>}]} {
    %c0 = arith.constant 0 : index
    %c0_0 = arith.constant 0 : index
    %0 = vector.load %arg1[%c0, %c0_0] : memref<128x16xf32, #tpu.memory_space<vmem>>, vector<128x16xf32>
    %cst = arith.constant dense<0xFF800000> : vector<128xf32>
    %1 = vector.multi_reduction <maximumf>, %0, %cst [1] : vector<128x16xf32> to vector<128xf32>
    %2 = vector.shape_cast %1 : vector<128xf32> to vector<128x1xf32>
    %3 = vector.broadcast %2 : vector<128x1xf32> to vector<128x16xf32>
    %4 = arith.subf %0, %3 : vector<128x16xf32>
    %5 = math.exp %4 : vector<128x16xf32>
    %cst_1 = arith.constant dense<0.000000e+00> : vector<128xf32>
    %6 = vector.multi_reduction <add>, %5, %cst_1 [1] : vector<128x16xf32> to vector<128xf32>
    %7 = vector.shape_cast %6 : vector<128xf32> to vector<128x1xf32>
    %8 = vector.broadcast %7 : vector<128x1xf32> to vector<128x16xf32>
    %9 = arith.divf %5, %8 : vector<128x16xf32>
    %c0_2 = arith.constant 0 : index
    %c0_3 = arith.constant 0 : index
    %10 = vector.load %arg3[%c0_2, %c0_3] : memref<16x128xf32, #tpu.memory_space<vmem>>, vector<16x128xf32>
    %cst_4 = arith.constant dense<0.000000e+00> : vector<128x128xf32>
    %11 = tpu.matmul %9, %10, %cst_4 {dimension_numbers = #tpu.dot_dimension_numbers<[1], [0], [0], [1], [0, 0, 1, 1], [], []>} : vector<128x16xf32>, vector<16x128xf32>, vector<128x128xf32> -> vector<128x128xf32>
    %c0_5 = arith.constant 0 : index
    %c0_6 = arith.constant 0 : index
    %c0_7 = arith.constant 0 : index
    %12 = vector.load %arg2[%c0_5, %c0_6, %c0_7] : memref<1x16x128xf32, #tpu.memory_space<vmem>>, vector<1x16x128xf32>
    %13 = vector.shape_cast %12 : vector<1x16x128xf32> to vector<16x128xf32>
    %14 = tpu.transpose %13, [1, 0] : vector<16x128xf32> -> vector<128x16xf32>
    %c0_8 = arith.constant 0 : index
    %c0_9 = arith.constant 0 : index
    %15 = vector.load %arg4[%c0_8, %c0_9] : memref<16x128xf32, #tpu.memory_space<vmem>>, vector<16x128xf32>
    %16 = vector.extract_strided_slice %14 {offsets = [0, 0], sizes = [128, 1], strides = [1, 1]} : vector<128x16xf32> to vector<128x1xf32>
    %17 = vector.extract_strided_slice %14 {offsets = [0, 1], sizes = [128, 1], strides = [1, 1]} : vector<128x16xf32> to vector<128x1xf32>
    %18 = vector.extract_strided_slice %14 {offsets = [0, 2], sizes = [128, 1], strides = [1, 1]} : vector<128x16xf32> to vector<128x1xf32>
    %19 = vector.extract_strided_slice %14 {offsets = [0, 3], sizes = [128, 1], strides = [1, 1]} : vector<128x16xf32> to vector<128x1xf32>
    %20 = vector.extract_strided_slice %14 {offsets = [0, 4], sizes = [128, 1], strides = [1, 1]} : vector<128x16xf32> to vector<128x1xf32>
    %21 = vector.extract_strided_slice %14 {offsets = [0, 5], sizes = [128, 1], strides = [1, 1]} : vector<128x16xf32> to vector<128x1xf32>
    %22 = vector.extract_strided_slice %14 {offsets = [0, 6], sizes = [128, 1], strides = [1, 1]} : vector<128x16xf32> to vector<128x1xf32>
    %23 = vector.extract_strided_slice %14 {offsets = [0, 7], sizes = [128, 1], strides = [1, 1]} : vector<128x16xf32> to vector<128x1xf32>
    %24 = vector.extract_strided_slice %14 {offsets = [0, 8], sizes = [128, 1], strides = [1, 1]} : vector<128x16xf32> to vector<128x1xf32>
    %25 = vector.extract_strided_slice %15 {offsets = [0, 0], sizes = [1, 128], strides = [1, 1]} : vector<16x128xf32> to vector<1x128xf32>
    %26 = vector.extract_strided_slice %15 {offsets = [1, 0], sizes = [1, 128], strides = [1, 1]} : vector<16x128xf32> to vector<1x128xf32>
    %27 = vector.extract_strided_slice %15 {offsets = [2, 0], sizes = [1, 128], strides = [1, 1]} : vector<16x128xf32> to vector<1x128xf32>
    %28 = vector.extract_strided_slice %15 {offsets = [3, 0], sizes = [1, 128], strides = [1, 1]} : vector<16x128xf32> to vector<1x128xf32>
    %29 = vector.extract_strided_slice %15 {offsets = [4, 0], sizes = [1, 128], strides = [1, 1]} : vector<16x128xf32> to vector<1x128xf32>
    %30 = vector.extract_strided_slice %15 {offsets = [5, 0], sizes = [1, 128], strides = [1, 1]} : vector<16x128xf32> to vector<1x128xf32>
    %31 = vector.extract_strided_slice %15 {offsets = [6, 0], sizes = [1, 128], strides = [1, 1]} : vector<16x128xf32> to vector<1x128xf32>
    %32 = vector.extract_strided_slice %15 {offsets = [7, 0], sizes = [1, 128], strides = [1, 1]} : vector<16x128xf32> to vector<1x128xf32>
    %33 = vector.extract_strided_slice %15 {offsets = [8, 0], sizes = [1, 128], strides = [1, 1]} : vector<16x128xf32> to vector<1x128xf32>
    %34 = vector.broadcast %16 : vector<128x1xf32> to vector<128x128xf32>
    %35 = vector.broadcast %25 : vector<1x128xf32> to vector<128x128xf32>
    %36 = arith.subf %34, %35 : vector<128x128xf32>
    %37 = math.absf %36 : vector<128x128xf32>
    %38 = vector.broadcast %17 : vector<128x1xf32> to vector<128x128xf32>
    %39 = vector.broadcast %26 : vector<1x128xf32> to vector<128x128xf32>
    %40 = arith.subf %38, %39 : vector<128x128xf32>
    %41 = math.absf %40 : vector<128x128xf32>
    %42 = arith.addf %37, %41 : vector<128x128xf32>
    %43 = vector.broadcast %18 : vector<128x1xf32> to vector<128x128xf32>
    %44 = vector.broadcast %27 : vector<1x128xf32> to vector<128x128xf32>
    %45 = arith.subf %43, %44 : vector<128x128xf32>
    %46 = math.absf %45 : vector<128x128xf32>
    %47 = arith.addf %42, %46 : vector<128x128xf32>
    %48 = vector.broadcast %19 : vector<128x1xf32> to vector<128x128xf32>
    %49 = vector.broadcast %28 : vector<1x128xf32> to vector<128x128xf32>
    %50 = arith.subf %48, %49 : vector<128x128xf32>
    %51 = math.absf %50 : vector<128x128xf32>
    %52 = arith.addf %47, %51 : vector<128x128xf32>
    %cst_10 = arith.constant 1.000000e+00 : f32
    %53 = vector.broadcast %cst_10 : f32 to vector<128x128xf32>
    %54 = arith.mulf %53, %52 : vector<128x128xf32>
    %55 = arith.addf %11, %54 : vector<128x128xf32>
    %56 = vector.broadcast %22 : vector<128x1xf32> to vector<128x128xf32>
    %57 = vector.broadcast %31 : vector<1x128xf32> to vector<128x128xf32>
    %58 = arith.minimumf %56, %57 : vector<128x128xf32>
    %59 = vector.broadcast %20 : vector<128x1xf32> to vector<128x128xf32>
    %60 = vector.broadcast %29 : vector<1x128xf32> to vector<128x128xf32>
    %61 = arith.maximumf %59, %60 : vector<128x128xf32>
    %62 = arith.subf %58, %61 : vector<128x128xf32>
    %cst_11 = arith.constant 0.000000e+00 : f32
    %63 = vector.broadcast %cst_11 : f32 to vector<128x128xf32>
    %64 = arith.maximumf %62, %63 : vector<128x128xf32>
    %65 = vector.broadcast %23 : vector<128x1xf32> to vector<128x128xf32>
    %66 = vector.broadcast %32 : vector<1x128xf32> to vector<128x128xf32>
    %67 = arith.minimumf %65, %66 : vector<128x128xf32>
    %68 = vector.broadcast %21 : vector<128x1xf32> to vector<128x128xf32>
    %69 = vector.broadcast %30 : vector<1x128xf32> to vector<128x128xf32>
    %70 = arith.maximumf %68, %69 : vector<128x128xf32>
    %71 = arith.subf %67, %70 : vector<128x128xf32>
    %cst_12 = arith.constant 0.000000e+00 : f32
    %72 = vector.broadcast %cst_12 : f32 to vector<128x128xf32>
    %73 = arith.maximumf %71, %72 : vector<128x128xf32>
    %74 = arith.mulf %64, %73 : vector<128x128xf32>
    %75 = vector.broadcast %24 : vector<128x1xf32> to vector<128x128xf32>
    %76 = vector.broadcast %33 : vector<1x128xf32> to vector<128x128xf32>
    %77 = arith.addf %75, %76 : vector<128x128xf32>
    %78 = arith.subf %77, %74 : vector<128x128xf32>
    %79 = arith.divf %74, %78 : vector<128x128xf32>
    %80 = vector.broadcast %22 : vector<128x1xf32> to vector<128x128xf32>
    %81 = vector.broadcast %31 : vector<1x128xf32> to vector<128x128xf32>
    %82 = arith.maximumf %80, %81 : vector<128x128xf32>
    %83 = vector.broadcast %20 : vector<128x1xf32> to vector<128x128xf32>
    %84 = vector.broadcast %29 : vector<1x128xf32> to vector<128x128xf32>
    %85 = arith.minimumf %83, %84 : vector<128x128xf32>
    %86 = arith.subf %82, %85 : vector<128x128xf32>
    %cst_13 = arith.constant 0.000000e+00 : f32
    %87 = vector.broadcast %cst_13 : f32 to vector<128x128xf32>
    %88 = arith.maximumf %86, %87 : vector<128x128xf32>
    %89 = vector.broadcast %23 : vector<128x1xf32> to vector<128x128xf32>
    %90 = vector.broadcast %32 : vector<1x128xf32> to vector<128x128xf32>
    %91 = arith.maximumf %89, %90 : vector<128x128xf32>
    %92 = vector.broadcast %21 : vector<128x1xf32> to vector<128x128xf32>
    %93 = vector.broadcast %30 : vector<1x128xf32> to vector<128x128xf32>
    %94 = arith.minimumf %92, %93 : vector<128x128xf32>
    %95 = arith.subf %91, %94 : vector<128x128xf32>
    %cst_14 = arith.constant 0.000000e+00 : f32
    %96 = vector.broadcast %cst_14 : f32 to vector<128x128xf32>
    %97 = arith.maximumf %95, %96 : vector<128x128xf32>
    %98 = arith.mulf %88, %97 : vector<128x128xf32>
    %99 = arith.subf %98, %78 : vector<128x128xf32>
    %100 = arith.divf %99, %98 : vector<128x128xf32>
    %101 = arith.subf %79, %100 : vector<128x128xf32>
    %cst_15 = arith.constant 1.000000e+00 : f32
    %102 = vector.broadcast %cst_15 : f32 to vector<128x128xf32>
    %103 = arith.mulf %102, %101 : vector<128x128xf32>
    %104 = arith.subf %55, %103 : vector<128x128xf32>
    %c0_16 = arith.constant 0 : index
    %c0_17 = arith.constant 0 : index
    %105 = vector.load %arg5[%c0_16, %c0_17] : memref<128x128xf32, #tpu.memory_space<vmem>>, vector<128x128xf32>
    tpu.vector_store %arg5[%c0_16, %c0_17], %104 {strides = array<i32>} : memref<128x128xf32, #tpu.memory_space<vmem>>, vector<128x128xf32>,
    return
  }
  func.func @transform_0(%arg0: i32) -> (i32, i32) {
    %c0_i32 = arith.constant 0 : i32
    %c0_i32_0 = arith.constant 0 : i32
    return %arg0, %c0_i32 : i32, i32
  }
  func.func @transform_1(%arg0: i32) -> (i32, i32, i32) {
    %c0_i32 = arith.constant 0 : i32
    %c0_i32_0 = arith.constant 0 : i32
    %c0_i32_1 = arith.constant 0 : i32
    return %arg0, %c0_i32, %c0_i32_0 : i32, i32, i32
  }
  func.func @transform_2(%arg0: i32) -> (i32, i32) {
    %c0_i32 = arith.constant 0 : i32
    %c0_i32_0 = arith.constant 0 : i32
    %c0_i32_1 = arith.constant 0 : i32
    return %c0_i32, %c0_i32_0 : i32, i32
  }
  func.func @transform_3(%arg0: i32) -> (i32, i32) {
    %c0_i32 = arith.constant 0 : i32
    %c0_i32_0 = arith.constant 0 : i32
    %c0_i32_1 = arith.constant 0 : i32
    return %c0_i32, %c0_i32_0 : i32, i32
  }
  func.func @transform_4(%arg0: i32) -> (i32, i32) {
    %c0_i32 = arith.constant 0 : i32
    %c0_i32_0 = arith.constant 0 : i32
    return %arg0, %c0_i32 : i32, i32
  }
}

</mosaic_0001>

<llo_original>
// kernel: tpu_custom_call.1
$region0: #{tpu_custom_call.1}
  #allocation0 [shape = 'u32[]', space=smem, size = 0x4, offset = 0x4, fixed_abs, tag = 'smem constant byte address 0x4 - core index']
  #allocation1 [shape = 'u32[72,128]{1,0:T(1,128)}', space=vmem, size = 0x9000, scoped, tag = 'internal scratch']
  %s0 = inlined_call_operand.vmem [shape: f32[200,16], index: 0, kind: input, shape index: {}]
  %s1 = inlined_call_operand.vmem [shape: f32[2,16,128], index: 1, kind: input, shape index: {}]
  %s2 = inlined_call_operand.vmem [shape: f32[16,128], index: 2, kind: input, shape index: {}]
  %s3 = inlined_call_operand.vmem [shape: f32[16,128], index: 3, kind: input, shape index: {}]
  %s4 = inlined_call_operand.hbm [shape: f32[200,128], index: 4, kind: output, shape index: {}]
  %s5 = sld [smem:[#allocation0]]
  $region49: #{tpu_custom_call.1} parent=0
    _
  %s7 = ssub.s32 1, %s5
  %s8 = scalar_select 0, %s7, %s5
  $region1: #{tpu_custom_call.1} parent=0
    #allocation2 [shape = 'u8[131072]{0}', space=vmem, size = 0x20000, scoped, tag = 'output window, operand 0']
    #allocation3 [shape = 's32[2]{0}', space=sflag, size = 0x8, scoped, tag = 'scoped memory for tpu_custom_call.1']
    %9 = vsyncpa [#allocation3], 0
    %s10 = scalar_lea.sflag [#allocation3], 1
    %11 = vsyncpa %s10, 0
    loop: start=0, step=1, limit=4
    $region2: #{tpu_custom_call.1} parent=1 // loop_pre_header
      _
    $region3: #{tpu_custom_call.1} parent=1 // loop_header
      %s13 = sphi 0, %s17
      %p14 = scmp.ge.s32.totalorder %s13, 4
      %s23 = sphi 0, %s25
      %s26 = sphi 0, %s23
      %s27 = sphi 0, %s26
      %s43 = sphi 0, %s27
      %s49 = sphi 0, %s51
      %s52 = sphi 0, %s49
      %s53 = sphi 0, %s52
      %s69 = sphi 0, %s53
      %s73 = sphi 0, %s73
      %s75 = sphi 0, %s73
      %s76 = sphi 0, %s75
      %s90 = sphi 0, %s76
      %s94 = sphi 0, %s94
      %s96 = sphi 0, %s94
      %s97 = sphi 0, %s96
      %s111 = sphi 0, %s97
      %s117 = sphi 0, %s119
      %s120 = sphi 0, %s117
      %s121 = sphi 0, %s120
      %s137 = sphi 0, %s121
    $region4: #{tpu_custom_call.1} parent=1 // loop_header_branch
      %16 = sbr.rel (%p14) target = $region8
    $region5: #{tpu_custom_call.1} parent=1 // loop_body
      %s18 = ssub.s32 %s13, 1
      %s19 = ssub.s32 %s13, 2
      %s20 = sadd.s32 %s13, 1
      %s21 = ssub.s32 %s13, %s20
      %p22 = scmp.eq.s32.totalorder %s21, 0
      %s24 = sadd.s32 %s23, 1
      %s25 = scalar_select %p22, %s23, %s24
      %p28 = pneg %p22
      %p29 = scmp.eq.s32.totalorder %s13, 1
      %p30 = por %p28, %p29
      %p31 = scmp.ne.s32.totalorder %s23, %s26
      %p32 = scmp.eq.s32.totalorder %s13, 0
      %p33 = por %p31, %p32
      %p34 = scmp.ne.s32.totalorder %s23, %s26
      %p35 = scmp.eq.s32.totalorder %s18, 1
      %p36 = por %p34, %p35
      %p37 = scmp.ne.s32.totalorder %s26, %s27
      %p38 = scmp.eq.s32.totalorder %s18, 0
      %p39 = por %p37, %p38
      %p40 = scmp.ne.s32.totalorder %s26, %s27
      %p41 = scmp.eq.s32.totalorder %s19, 1
      %p42 = por %p40, %p41
      %p44 = scmp.ne.s32.totalorder %s27, %s43
      %p45 = scmp.eq.s32.totalorder %s19, 0
      %p46 = por %p44, %p45
      %s47 = ssub.s32 %s13, %s20
      %p48 = scmp.eq.s32.totalorder %s47, 0
      %s50 = sadd.s32 %s49, 1
      %s51 = scalar_select %p48, %s49, %s50
      %p54 = pneg %p48
      %p55 = scmp.eq.s32.totalorder %s13, 1
      %p56 = por %p54, %p55
      %p57 = scmp.ne.s32.totalorder %s49, %s52
      %p58 = scmp.eq.s32.totalorder %s13, 0
      %p59 = por %p57, %p58
      %p60 = scmp.ne.s32.totalorder %s49, %s52
      %p61 = scmp.eq.s32.totalorder %s18, 1
      %p62 = por %p60, %p61
      %p63 = scmp.ne.s32.totalorder %s52, %s53
      %p64 = scmp.eq.s32.totalorder %s18, 0
      %p65 = por %p63, %p64
      %p66 = scmp.ne.s32.totalorder %s52, %s53
      %p67 = scmp.eq.s32.totalorder %s19, 1
      %p68 = por %p66, %p67
      %p70 = scmp.ne.s32.totalorder %s53, %s69
      %p71 = scmp.eq.s32.totalorder %s19, 0
      %p72 = por %p70, %p71
      %s74 = sadd.s32 %s73, 1
      %p77 = scmp.eq.s32.totalorder %s13, 1
      %p78 = scmp.ne.s32.totalorder %s73, %s75
      %p79 = scmp.eq.s32.totalorder %s13, 0
      %p80 = por %p78, %p79
      %p81 = scmp.ne.s32.totalorder %s73, %s75
      %p82 = scmp.eq.s32.totalorder %s18, 1
      %p83 = por %p81, %p82
      %p84 = scmp.ne.s32.totalorder %s75, %s76
      %p85 = scmp.eq.s32.totalorder %s18, 0
      %p86 = por %p84, %p85
      %p87 = scmp.ne.s32.totalorder %s75, %s76
      %p88 = scmp.eq.s32.totalorder %s19, 1
      %p89 = por %p87, %p88
      %p91 = scmp.ne.s32.totalorder %s76, %s90
      %p92 = scmp.eq.s32.totalorder %s19, 0
      %p93 = por %p91, %p92
      %s95 = sadd.s32 %s94, 1
      %p98 = scmp.eq.s32.totalorder %s13, 1
      %p99 = scmp.ne.s32.totalorder %s94, %s96
      %p100 = scmp.eq.s32.totalorder %s13, 0
      %p101 = por %p99, %p100
      %p102 = scmp.ne.s32.totalorder %s94, %s96
      %p103 = scmp.eq.s32.totalorder %s18, 1
      %p104 = por %p102, %p103
      %p105 = scmp.ne.s32.totalorder %s96, %s97
      %p106 = scmp.eq.s32.totalorder %s18, 0
      %p107 = por %p105, %p106
      %p108 = scmp.ne.s32.totalorder %s96, %s97
      %p109 = scmp.eq.s32.totalorder %s19, 1
      %p110 = por %p108, %p109
      %p112 = scmp.ne.s32.totalorder %s97, %s111
      %p113 = scmp.eq.s32.totalorder %s19, 0
      %p114 = por %p112, %p113
      %s115 = ssub.s32 %s13, %s20
      %p116 = scmp.eq.s32.totalorder %s115, 0
      %s118 = sadd.s32 %s117, 1
      %s119 = scalar_select %p116, %s117, %s118
      %p122 = pneg %p116
      %p123 = scmp.eq.s32.totalorder %s13, 1
      %p124 = por %p122, %p123
      %p125 = scmp.ne.s32.totalorder %s117, %s120
      %p126 = scmp.eq.s32.totalorder %s13, 0
      %p127 = por %p125, %p126
      %p128 = scmp.ne.s32.totalorder %s117, %s120
      %p129 = scmp.eq.s32.totalorder %s18, 1
      %p130 = por %p128, %p129
      %p131 = scmp.ne.s32.totalorder %s120, %s121
      %p132 = scmp.eq.s32.totalorder %s18, 0
      %p133 = por %p131, %p132
      %p134 = scmp.ne.s32.totalorder %s120, %s121
      %p135 = scmp.eq.s32.totalorder %s19, 1
      %p136 = por %p134, %p135
      %p138 = scmp.ne.s32.totalorder %s121, %s137
      %p139 = scmp.eq.s32.totalorder %s19, 0
      %p140 = por %p138, %p139
      %p141 = scmp.le.s32.totalorder 1, %s13
      %p142 = scmp.lt.s32.totalorder %s13, 3
      %p143 = pnand %p141, %p142
      %p144 = pneg %p143
      // Predicated region
      $region9: #{tpu_custom_call.1} parent=5 // pred_check
        _
      $region10: #{tpu_custom_call.1} parent=5 // pred_check_branch
        %146 = sbr.rel (%p143) target = $region12
      $region11: #{tpu_custom_call.1} parent=5 // pred_region
        %s147 = ssub.s32 %s13, 1
        // Predicated region
        $region13: #{tpu_custom_call.1} parent=11 // pred_check
          %p148 = pneg %p86
        $region14: #{tpu_custom_call.1} parent=11 // pred_check_branch
          %150 = sbr.rel (%p148) target = $region16
        $region15: #{tpu_custom_call.1} parent=11 // pred_region
          _
        $region16: #{tpu_custom_call.1} parent=11 // pred_fallthru
          _
        // Predicated region
        $region17: #{tpu_custom_call.1} parent=11 // pred_check
          %p151 = pneg %p107
        $region18: #{tpu_custom_call.1} parent=11 // pred_check_branch
          %153 = sbr.rel (%p151) target = $region20
        $region19: #{tpu_custom_call.1} parent=11 // pred_region
          _
        $region20: #{tpu_custom_call.1} parent=11 // pred_fallthru
          _
      $region12: #{tpu_custom_call.1} parent=5 // pred_fallthru
        _
      %p154 = scmp.lt.s32.totalorder %s13, 2
      // Predicated region
      $region21: #{tpu_custom_call.1} parent=5 // pred_check
        %p155 = pneg %p154
      $region22: #{tpu_custom_call.1} parent=5 // pred_check_branch
        %157 = sbr.rel (%p155) target = $region24
      $region23: #{tpu_custom_call.1} parent=5 // pred_region
        // Predicated region
        $region25: #{tpu_custom_call.1} parent=23 // pred_check
          %p158 = pneg %p33
        $region26: #{tpu_custom_call.1} parent=23 // pred_check_branch
          %160 = sbr.rel (%p158) target = $region28
        $region27: #{tpu_custom_call.1} parent=23 // pred_region
          %s161 = smul.u32 16, %s13
          %s162 = ssub.s32 25, %s161
          %p163 = scmp.lt.s32.totalorder %s162, 16
          %s164 = scalar_select %p163, %s162, 16
          %s165 = smul.u32 8, %s164
          %p166 = scmp.lt.s32.totalorder %s161, 24
          %s167 = scalar_select %p166, %s161, 24
          %s168 = smul.addr %s167, 8
          %s169 = scalar_lea.vmem %s0, %s168
          %s170 = smul.u32 16, %s13
          %s171 = ssub.s32 25, %s170
          %p172 = scmp.lt.s32.totalorder %s171, 16
          %s173 = scalar_select %p172, %s171, 16
          %s174 = smul.u32 8, %s173
        $region28: #{tpu_custom_call.1} parent=23 // pred_fallthru
          _
        // Predicated region
        $region29: #{tpu_custom_call.1} parent=23 // pred_check
          %p175 = pneg %p59
        $region30: #{tpu_custom_call.1} parent=23 // pred_check_branch
          %177 = sbr.rel (%p175) target = $region32
        $region31: #{tpu_custom_call.1} parent=23 // pred_region
          %p178 = scmp.lt.s32.totalorder %s13, 1
          %s179 = scalar_select %p178, %s13, 1
          %s180 = smul.addr %s179, 2
          %s181 = smul.addr %s180, 8
          %s182 = scalar_lea.vmem %s1, %s181
        $region32: #{tpu_custom_call.1} parent=23 // pred_fallthru
          _
      $region24: #{tpu_custom_call.1} parent=5 // pred_fallthru
        _
      %p183 = scmp.le.s32.totalorder 1, %s13
      %p184 = scmp.lt.s32.totalorder %s13, 3
      %p185 = pnand %p183, %p184
      %p186 = pneg %p185
      // Predicated region
      $region33: #{tpu_custom_call.1} parent=5 // pred_check
        _
      $region34: #{tpu_custom_call.1} parent=5 // pred_check_branch
        %188 = sbr.rel (%p185) target = $region36
      $region35: #{tpu_custom_call.1} parent=5 // pred_region
        %s189 = ssub.s32 %s13, 1
        %s190 = smul.u32 16, %s18
        %s191 = ssub.s32 25, %s190
        %p192 = scmp.lt.s32.totalorder %s191, 16
        %s193 = scalar_select %p192, %s191, 16
        %s194 = smul.u32 8, %s193
        %p195 = scmp.lt.s32.totalorder %s190, 24
        %s196 = scalar_select %p195, %s190, 24
        %s197 = smul.addr %s196, 8
        %s198 = scalar_lea.vmem %s0, %s197
        %p199 = pneg %p39
        %p200 = pneg %p36
        %p201 = scmp.lt.s32.totalorder %s18, 1
        %s202 = scalar_select %p201, %s18, 1
        %s203 = smul.addr %s202, 2
        %s204 = smul.addr %s203, 8
        %s205 = scalar_lea.vmem %s1, %s204
        %p206 = pneg %p65
        %p207 = pneg %p62
        %p208 = pneg %p86
        %p209 = pneg %p83
        %p210 = pneg %p107
        %p211 = pneg %p104
        %p212 = pneg %p133
        %p213 = pneg %p130
        %s214 = sand.u32 %s120, 1
        %s215 = scalar_lea.sflag [#allocation3], %s214
        %s216 = sand.u32 %s120, 1
        %s217 = smul.addr %s216, 128
        %s218 = scalar_lea.vmem [#allocation2], %s217
        %s219 = smul.u32 16, %s18
        %s220 = ssub.s32 25, %s219
        %p221 = scmp.lt.s32.totalorder %s220, 16
        %s222 = scalar_select %p221, %s220, 16
        %s223 = smul.u32 8, %s222
        %p224 = scmp.lt.s32.totalorder %s219, 24
        %s225 = scalar_select %p224, %s219, 24
        %s226 = smul.addr %s225, 8
        %s227 = scalar_lea.vmem %s0, %s226
        %s228 = smul.u32 16, %s18
        %s229 = ssub.s32 25, %s228
        %p230 = scmp.lt.s32.totalorder %s229, 16
        %s231 = scalar_select %p230, %s229, 16
        %s232 = smul.u32 8, %s231
        %p233 = scmp.lt.s32.totalorder %s18, 1
        %s234 = scalar_select %p233, %s18, 1
        %s235 = smul.addr %s234, 2
        %s236 = smul.addr %s235, 8
        %s237 = scalar_lea.vmem %s1, %s236
        %s238 = smul.u32 16, %s18
        %s239 = ssub.s32 25, %s238
        %p240 = scmp.lt.s32.totalorder %s239, 16
        %s241 = scalar_select %p240, %s239, 16
        %s242 = smul.u32 8, %s241
        %v243 = vld [vmem:[%s227] sm:$0xff]
        %v244 = vld [vmem:[%s227 + $0x8] sm:$0xff]
        %v245 = vld [vmem:[%s227 + $0x10] sm:$0xff]
        %v246 = vld [vmem:[%s227 + $0x18] sm:$0xff]
        %v247 = vld [vmem:[%s227 + $0x20] sm:$0xff]
        %v248 = vld [vmem:[%s227 + $0x28] sm:$0xff]
        %v249 = vld [vmem:[%s227 + $0x30] sm:$0xff]
        %v250 = vld [vmem:[%s227 + $0x38] sm:$0xff]
        %v251 = vld [vmem:[%s227 + $0x40] sm:$0xff]
        %v252 = vld [vmem:[%s227 + $0x48] sm:$0xff]
        %v253 = vld [vmem:[%s227 + $0x50] sm:$0xff]
        %v254 = vld [vmem:[%s227 + $0x58] sm:$0xff]
        %v255 = vld [vmem:[%s227 + $0x60] sm:$0xff]
        %v256 = vld [vmem:[%s227 + $0x68] sm:$0xff]
        %v257 = vld [vmem:[%s227 + $0x70] sm:$0xff]
        %v258 = vld [vmem:[%s227 + $0x78] sm:$0xff]
        %vm259 = vcmask 130048
        %v260 = vsel %vm259, %v243, -inf
        %261 = vmax.xlane.f32.xlu0 %v260
        %v262 = vpop.xlane.xlu0 %261
        %v263 = vsel %vm259, %v244, -inf
        %264 = vmax.xlane.f32.xlu0 %v263
        %v265 = vpop.xlane.xlu0 %264
        %v266 = vsel %vm259, %v245, -inf
        %267 = vmax.xlane.f32.xlu0 %v266
        %v268 = vpop.xlane.xlu0 %267
        %v269 = vsel %vm259, %v246, -inf
        %270 = vmax.xlane.f32.xlu0 %v269
        %v271 = vpop.xlane.xlu0 %270
        %v272 = vsel %vm259, %v247, -inf
        %273 = vmax.xlane.f32.xlu0 %v272
        %v274 = vpop.xlane.xlu0 %273
        %v275 = vsel %vm259, %v248, -inf
        %276 = vmax.xlane.f32.xlu0 %v275
        %v277 = vpop.xlane.xlu0 %276
        %v278 = vsel %vm259, %v249, -inf
        %279 = vmax.xlane.f32.xlu0 %v278
        %v280 = vpop.xlane.xlu0 %279
        %v281 = vsel %vm259, %v250, -inf
        %282 = vmax.xlane.f32.xlu0 %v281
        %v283 = vpop.xlane.xlu0 %282
        %v284 = vsel %vm259, %v251, -inf
        %285 = vmax.xlane.f32.xlu0 %v284
        %v286 = vpop.xlane.xlu0 %285
        %v287 = vsel %vm259, %v252, -inf
        %288 = vmax.xlane.f32.xlu0 %v287
        %v289 = vpop.xlane.xlu0 %288
        %v290 = vsel %vm259, %v253, -inf
        %291 = vmax.xlane.f32.xlu0 %v290
        %v292 = vpop.xlane.xlu0 %291
        %v293 = vsel %vm259, %v254, -inf
        %294 = vmax.xlane.f32.xlu0 %v293
        %v295 = vpop.xlane.xlu0 %294
        %v296 = vsel %vm259, %v255, -inf
        %297 = vmax.xlane.f32.xlu0 %v296
        %v298 = vpop.xlane.xlu0 %297
        %v299 = vsel %vm259, %v256, -inf
        %300 = vmax.xlane.f32.xlu0 %v299
        %v301 = vpop.xlane.xlu0 %300
        %v302 = vsel %vm259, %v257, -inf
        %303 = vmax.xlane.f32.xlu0 %v302
        %v304 = vpop.xlane.xlu0 %303
        %v305 = vsel %vm259, %v258, -inf
        %306 = vmax.xlane.f32.xlu0 %v305
        %v307 = vpop.xlane.xlu0 %306
        %v308 = vsub.f32 %v243, %v262
        %v309 = vsub.f32 %v244, %v265
        %v310 = vsub.f32 %v245, %v268
        %v311 = vsub.f32 %v246, %v271
        %v312 = vsub.f32 %v247, %v274
        %v313 = vsub.f32 %v248, %v277
        %v314 = vsub.f32 %v249, %v280
        %v315 = vsub.f32 %v250, %v283
        %v316 = vsub.f32 %v251, %v286
        %v317 = vsub.f32 %v252, %v289
        %v318 = vsub.f32 %v253, %v292
        %v319 = vsub.f32 %v254, %v295
        %v320 = vsub.f32 %v255, %v298
        %v321 = vsub.f32 %v256, %v301
        %v322 = vsub.f32 %v257, %v304
        %v323 = vsub.f32 %v258, %v307
        %v324 = vmul.f32 %v308, 1.442695
        %v325 = vpow.pop %v324
        %v326 = vmul.f32 %v309, 1.442695
        %v327 = vpow.pop %v326
        %v328 = vmul.f32 %v310, 1.442695
        %v329 = vpow.pop %v328
        %v330 = vmul.f32 %v311, 1.442695
        %v331 = vpow.pop %v330
        %v332 = vmul.f32 %v312, 1.442695
        %v333 = vpow.pop %v332
        %v334 = vmul.f32 %v313, 1.442695
        %v335 = vpow.pop %v334
        %v336 = vmul.f32 %v314, 1.442695
        %v337 = vpow.pop %v336
        %v338 = vmul.f32 %v315, 1.442695
        %v339 = vpow.pop %v338
        %v340 = vmul.f32 %v316, 1.442695
        %v341 = vpow.pop %v340
        %v342 = vmul.f32 %v317, 1.442695
        %v343 = vpow.pop %v342
        %v344 = vmul.f32 %v318, 1.442695
        %v345 = vpow.pop %v344
        %v346 = vmul.f32 %v319, 1.442695
        %v347 = vpow.pop %v346
        %v348 = vmul.f32 %v320, 1.442695
        %v349 = vpow.pop %v348
        %v350 = vmul.f32 %v321, 1.442695
        %v351 = vpow.pop %v350
        %v352 = vmul.f32 %v322, 1.442695
        %v353 = vpow.pop %v352
        %v354 = vmul.f32 %v323, 1.442695
        %v355 = vpow.pop %v354
        %v356 = vsel %vm259, %v325, 0.0
        %357 = vadd.xlane.f32.xlu0 %v356
        %v358 = vpop.xlane.xlu0 %357
        %v359 = vsel %vm259, %v327, 0.0
        %360 = vadd.xlane.f32.xlu0 %v359
        %v361 = vpop.xlane.xlu0 %360
        %v362 = vsel %vm259, %v329, 0.0
        %363 = vadd.xlane.f32.xlu0 %v362
        %v364 = vpop.xlane.xlu0 %363
        %v365 = vsel %vm259, %v331, 0.0
        %366 = vadd.xlane.f32.xlu0 %v365
        %v367 = vpop.xlane.xlu0 %366
        %v368 = vsel %vm259, %v333, 0.0
        %369 = vadd.xlane.f32.xlu0 %v368
        %v370 = vpop.xlane.xlu0 %369
        %v371 = vsel %vm259, %v335, 0.0
        %372 = vadd.xlane.f32.xlu0 %v371
        %v373 = vpop.xlane.xlu0 %372
        %v374 = vsel %vm259, %v337, 0.0
        %375 = vadd.xlane.f32.xlu0 %v374
        %v376 = vpop.xlane.xlu0 %375
        %v377 = vsel %vm259, %v339, 0.0
        %378 = vadd.xlane.f32.xlu0 %v377
        %v379 = vpop.xlane.xlu0 %378
        %v380 = vsel %vm259, %v341, 0.0
        %381 = vadd.xlane.f32.xlu0 %v380
        %v382 = vpop.xlane.xlu0 %381
        %v383 = vsel %vm259, %v343, 0.0
        %384 = vadd.xlane.f32.xlu0 %v383
        %v385 = vpop.xlane.xlu0 %384
        %v386 = vsel %vm259, %v345, 0.0
        %387 = vadd.xlane.f32.xlu0 %v386
        %v388 = vpop.xlane.xlu0 %387
        %v389 = vsel %vm259, %v347, 0.0
        %390 = vadd.xlane.f32.xlu0 %v389
        %v391 = vpop.xlane.xlu0 %390
        %v392 = vsel %vm259, %v349, 0.0
        %393 = vadd.xlane.f32.xlu0 %v392
        %v394 = vpop.xlane.xlu0 %393
        %v395 = vsel %vm259, %v351, 0.0
        %396 = vadd.xlane.f32.xlu0 %v395
        %v397 = vpop.xlane.xlu0 %396
        %v398 = vsel %vm259, %v353, 0.0
        %399 = vadd.xlane.f32.xlu0 %v398
        %v400 = vpop.xlane.xlu0 %399
        %v401 = vsel %vm259, %v355, 0.0
        %402 = vadd.xlane.f32.xlu0 %v401
        %v403 = vpop.xlane.xlu0 %402
        %v404 = vrcp.pop %v358
        %v405 = vmul.f32 %v358, %v404
        %v406 = vsub.f32 1.0, %v405
        %v407 = vmul.f32 %v404, %v406
        %v408 = vadd.f32 %v404, %v407
        %vm409 = vweird.f32 %v358
        %vm410 = vweird.f32 %v404
        %vm411 = vmor %vm409, %vm410
        %v412 = vsel %vm411, %v404, %v408
        %v413 = vand.u32 2147483647, %v358
        %vm414 = vcmp.eq.f32.partialorder %v413, 8.507059e+37
        %v415 = vand.u32 %v358, 2147483648
        %v416 = vor.u32 1.1754944e-38, %v415
        %v417 = vsel %vm414, %v416, %v412
        %v418 = vmul.f32 %v325, %v417
        %v419 = vrcp.pop %v361
        %v420 = vmul.f32 %v361, %v419
        %v421 = vsub.f32 1.0, %v420
        %v422 = vmul.f32 %v419, %v421
        %v423 = vadd.f32 %v419, %v422
        %vm424 = vweird.f32 %v361
        %vm425 = vweird.f32 %v419
        %vm426 = vmor %vm424, %vm425
        %v427 = vsel %vm426, %v419, %v423
        %v428 = vand.u32 2147483647, %v361
        %vm429 = vcmp.eq.f32.partialorder %v428, 8.507059e+37
        %v430 = vand.u32 %v361, 2147483648
        %v431 = vor.u32 1.1754944e-38, %v430
        %v432 = vsel %vm429, %v431, %v427
        %v433 = vmul.f32 %v327, %v432
        %v434 = vrcp.pop %v364
        %v435 = vmul.f32 %v364, %v434
        %v436 = vsub.f32 1.0, %v435
        %v437 = vmul.f32 %v434, %v436
        %v438 = vadd.f32 %v434, %v437
        %vm439 = vweird.f32 %v364
        %vm440 = vweird.f32 %v434
        %vm441 = vmor %vm439, %vm440
        %v442 = vsel %vm441, %v434, %v438
        %v443 = vand.u32 2147483647, %v364
        %vm444 = vcmp.eq.f32.partialorder %v443, 8.507059e+37
        %v445 = vand.u32 %v364, 2147483648
        %v446 = vor.u32 1.1754944e-38, %v445
        %v447 = vsel %vm444, %v446, %v442
        %v448 = vmul.f32 %v329, %v447
        %v449 = vrcp.pop %v367
        %v450 = vmul.f32 %v367, %v449
        %v451 = vsub.f32 1.0, %v450
        %v452 = vmul.f32 %v449, %v451
        %v453 = vadd.f32 %v449, %v452
        %vm454 = vweird.f32 %v367
        %vm455 = vweird.f32 %v449
        %vm456 = vmor %vm454, %vm455
        %v457 = vsel %vm456, %v449, %v453
        %v458 = vand.u32 2147483647, %v367
        %vm459 = vcmp.eq.f32.partialorder %v458, 8.507059e+37
        %v460 = vand.u32 %v367, 2147483648
        %v461 = vor.u32 1.1754944e-38, %v460
        %v462 = vsel %vm459, %v461, %v457
        %v463 = vmul.f32 %v331, %v462
        %v464 = vrcp.pop %v370
        %v465 = vmul.f32 %v370, %v464
        %v466 = vsub.f32 1.0, %v465
        %v467 = vmul.f32 %v464, %v466
        %v468 = vadd.f32 %v464, %v467
        %vm469 = vweird.f32 %v370
        %vm470 = vweird.f32 %v464
        %vm471 = vmor %vm469, %vm470
        %v472 = vsel %vm471, %v464, %v468
        %v473 = vand.u32 2147483647, %v370
        %vm474 = vcmp.eq.f32.partialorder %v473, 8.507059e+37
        %v475 = vand.u32 %v370, 2147483648
        %v476 = vor.u32 1.1754944e-38, %v475
        %v477 = vsel %vm474, %v476, %v472
        %v478 = vmul.f32 %v333, %v477
        %v479 = vrcp.pop %v373
        %v480 = vmul.f32 %v373, %v479
        %v481 = vsub.f32 1.0, %v480
        %v482 = vmul.f32 %v479, %v481
        %v483 = vadd.f32 %v479, %v482
        %vm484 = vweird.f32 %v373
        %vm485 = vweird.f32 %v479
        %vm486 = vmor %vm484, %vm485
        %v487 = vsel %vm486, %v479, %v483
        %v488 = vand.u32 2147483647, %v373
        %vm489 = vcmp.eq.f32.partialorder %v488, 8.507059e+37
        %v490 = vand.u32 %v373, 2147483648
        %v491 = vor.u32 1.1754944e-38, %v490
        %v492 = vsel %vm489, %v491, %v487
        %v493 = vmul.f32 %v335, %v492
        %v494 = vrcp.pop %v376
        %v495 = vmul.f32 %v376, %v494
        %v496 = vsub.f32 1.0, %v495
        %v497 = vmul.f32 %v494, %v496
        %v498 = vadd.f32 %v494, %v497
        %vm499 = vweird.f32 %v376
        %vm500 = vweird.f32 %v494
        %vm501 = vmor %vm499, %vm500
        %v502 = vsel %vm501, %v494, %v498
        %v503 = vand.u32 2147483647, %v376
        %vm504 = vcmp.eq.f32.partialorder %v503, 8.507059e+37
        %v505 = vand.u32 %v376, 2147483648
        %v506 = vor.u32 1.1754944e-38, %v505
        %v507 = vsel %vm504, %v506, %v502
        %v508 = vmul.f32 %v337, %v507
        %v509 = vrcp.pop %v379
        %v510 = vmul.f32 %v379, %v509
        %v511 = vsub.f32 1.0, %v510
        %v512 = vmul.f32 %v509, %v511
        %v513 = vadd.f32 %v509, %v512
        %vm514 = vweird.f32 %v379
        %vm515 = vweird.f32 %v509
        %vm516 = vmor %vm514, %vm515
        %v517 = vsel %vm516, %v509, %v513
        %v518 = vand.u32 2147483647, %v379
        %vm519 = vcmp.eq.f32.partialorder %v518, 8.507059e+37
        %v520 = vand.u32 %v379, 2147483648
        %v521 = vor.u32 1.1754944e-38, %v520
        %v522 = vsel %vm519, %v521, %v517
        %v523 = vmul.f32 %v339, %v522
        %v524 = vrcp.pop %v382
        %v525 = vmul.f32 %v382, %v524
        %v526 = vsub.f32 1.0, %v525
        %v527 = vmul.f32 %v524, %v526
        %v528 = vadd.f32 %v524, %v527
        %vm529 = vweird.f32 %v382
        %vm530 = vweird.f32 %v524
        %vm531 = vmor %vm529, %vm530
        %v532 = vsel %vm531, %v524, %v528
        %v533 = vand.u32 2147483647, %v382
        %vm534 = vcmp.eq.f32.partialorder %v533, 8.507059e+37
        %v535 = vand.u32 %v382, 2147483648
        %v536 = vor.u32 1.1754944e-38, %v535
        %v537 = vsel %vm534, %v536, %v532
        %v538 = vmul.f32 %v341, %v537
        %v539 = vrcp.pop %v385
        %v540 = vmul.f32 %v385, %v539
        %v541 = vsub.f32 1.0, %v540
        %v542 = vmul.f32 %v539, %v541
        %v543 = vadd.f32 %v539, %v542
        %vm544 = vweird.f32 %v385
        %vm545 = vweird.f32 %v539
        %vm546 = vmor %vm544, %vm545
        %v547 = vsel %vm546, %v539, %v543
        %v548 = vand.u32 2147483647, %v385
        %vm549 = vcmp.eq.f32.partialorder %v548, 8.507059e+37
        %v550 = vand.u32 %v385, 2147483648
        %v551 = vor.u32 1.1754944e-38, %v550
        %v552 = vsel %vm549, %v551, %v547
        %v553 = vmul.f32 %v343, %v552
        %v554 = vrcp.pop %v388
        %v555 = vmul.f32 %v388, %v554
        %v556 = vsub.f32 1.0, %v555
        %v557 = vmul.f32 %v554, %v556
        %v558 = vadd.f32 %v554, %v557
        %vm559 = vweird.f32 %v388
        %vm560 = vweird.f32 %v554
        %vm561 = vmor %vm559, %vm560
        %v562 = vsel %vm561, %v554, %v558
        %v563 = vand.u32 2147483647, %v388
        %vm564 = vcmp.eq.f32.partialorder %v563, 8.507059e+37
        %v565 = vand.u32 %v388, 2147483648
        %v566 = vor.u32 1.1754944e-38, %v565
        %v567 = vsel %vm564, %v566, %v562
        %v568 = vmul.f32 %v345, %v567
        %v569 = vrcp.pop %v391
        %v570 = vmul.f32 %v391, %v569
        %v571 = vsub.f32 1.0, %v570
        %v572 = vmul.f32 %v569, %v571
        %v573 = vadd.f32 %v569, %v572
        %vm574 = vweird.f32 %v391
        %vm575 = vweird.f32 %v569
        %vm576 = vmor %vm574, %vm575
        %v577 = vsel %vm576, %v569, %v573
        %v578 = vand.u32 2147483647, %v391
        %vm579 = vcmp.eq.f32.partialorder %v578, 8.507059e+37
        %v580 = vand.u32 %v391, 2147483648
        %v581 = vor.u32 1.1754944e-38, %v580
        %v582 = vsel %vm579, %v581, %v577
        %v583 = vmul.f32 %v347, %v582
        %v584 = vrcp.pop %v394
        %v585 = vmul.f32 %v394, %v584
        %v586 = vsub.f32 1.0, %v585
        %v587 = vmul.f32 %v584, %v586
        %v588 = vadd.f32 %v584, %v587
        %vm589 = vweird.f32 %v394
        %vm590 = vweird.f32 %v584
        %vm591 = vmor %vm589, %vm590
        %v592 = vsel %vm591, %v584, %v588
        %v593 = vand.u32 2147483647, %v394
        %vm594 = vcmp.eq.f32.partialorder %v593, 8.507059e+37
        %v595 = vand.u32 %v394, 2147483648
        %v596 = vor.u32 1.1754944e-38, %v595
        %v597 = vsel %vm594, %v596, %v592
        %v598 = vmul.f32 %v349, %v597
        %v599 = vrcp.pop %v397
        %v600 = vmul.f32 %v397, %v599
        %v601 = vsub.f32 1.0, %v600
        %v602 = vmul.f32 %v599, %v601
        %v603 = vadd.f32 %v599, %v602
        %vm604 = vweird.f32 %v397
        %vm605 = vweird.f32 %v599
        %vm606 = vmor %vm604, %vm605
        %v607 = vsel %vm606, %v599, %v603
        %v608 = vand.u32 2147483647, %v397
        %vm609 = vcmp.eq.f32.partialorder %v608, 8.507059e+37
        %v610 = vand.u32 %v397, 2147483648
        %v611 = vor.u32 1.1754944e-38, %v610
        %v612 = vsel %vm609, %v611, %v607
        %v613 = vmul.f32 %v351, %v612
        %v614 = vrcp.pop %v400
        %v615 = vmul.f32 %v400, %v614
        %v616 = vsub.f32 1.0, %v615
        %v617 = vmul.f32 %v614, %v616
        %v618 = vadd.f32 %v614, %v617
        %vm619 = vweird.f32 %v400
        %vm620 = vweird.f32 %v614
        %vm621 = vmor %vm619, %vm620
        %v622 = vsel %vm621, %v614, %v618
        %v623 = vand.u32 2147483647, %v400
        %vm624 = vcmp.eq.f32.partialorder %v623, 8.507059e+37
        %v625 = vand.u32 %v400, 2147483648
        %v626 = vor.u32 1.1754944e-38, %v625
        %v627 = vsel %vm624, %v626, %v622
        %v628 = vmul.f32 %v353, %v627
        %v629 = vrcp.pop %v403
        %v630 = vmul.f32 %v403, %v629
        %v631 = vsub.f32 1.0, %v630
        %v632 = vmul.f32 %v629, %v631
        %v633 = vadd.f32 %v629, %v632
        %vm634 = vweird.f32 %v403
        %vm635 = vweird.f32 %v629
        %vm636 = vmor %vm634, %vm635
        %v637 = vsel %vm636, %v629, %v633
        %v638 = vand.u32 2147483647, %v403
        %vm639 = vcmp.eq.f32.partialorder %v638, 8.507059e+37
        %v640 = vand.u32 %v403, 2147483648
        %v641 = vor.u32 1.1754944e-38, %v640
        %v642 = vsel %vm639, %v641, %v637
        %v643 = vmul.f32 %v355, %v642
        %v644 = vld [vmem:[%s2] sm:$0xff]
        %v645 = vld [vmem:[%s2 + $0x8] sm:$0xff]
        %v646 = vld [vmem:[%s237] sm:$0xff]
        %v647 = vld [vmem:[%s237 + $0x8] sm:$0xff]
        %648 = vxpose.xlu0.b32.start [1/16] %v646, 128
        %649 = vxpose.xlu0.b32.cont [2/16] %v647, 128
        %650 = vxpose.xlu0.b32.cont [3/16] 0.0, 128
        %651 = vxpose.xlu0.b32.cont [4/16] 0.0, 128
        %652 = vxpose.xlu0.b32.cont [5/16] 0.0, 128
        %653 = vxpose.xlu0.b32.cont [6/16] 0.0, 128
        %654 = vxpose.xlu0.b32.cont [7/16] 0.0, 128
        %655 = vxpose.xlu0.b32.cont [8/16] 0.0, 128
        %656 = vxpose.xlu0.b32.cont [9/16] 0.0, 128
        %657 = vxpose.xlu0.b32.cont [10/16] 0.0, 128
        %658 = vxpose.xlu0.b32.cont [11/16] 0.0, 128
        %659 = vxpose.xlu0.b32.cont [12/16] 0.0, 128
        %660 = vxpose.xlu0.b32.cont [13/16] 0.0, 128
        %661 = vxpose.xlu0.b32.cont [14/16] 0.0, 128
        %662 = vxpose.xlu0.b32.cont [15/16] 0.0, 128
        %663 = vxpose.xlu0.b32.end [16/16] 0.0, 128
        %v664 = vpop.trf.xlu0
        %v665 = vpop.trf.xlu0
        %v666 = vpop.trf.xlu0
        %v667 = vpop.trf.xlu0
        %v668 = vpop.trf.xlu0
        %v669 = vpop.trf.xlu0
        %v670 = vpop.trf.xlu0
        %v671 = vpop.trf.xlu0
        %v672 = vpop.trf.xlu0
        %v673 = vpop.trf.xlu0
        %v674 = vpop.trf.xlu0
        %v675 = vpop.trf.xlu0
        %v676 = vpop.trf.xlu0
        %v677 = vpop.trf.xlu0
        %v678 = vpop.trf.xlu0
        %v679 = vpop.trf.xlu0
        %v680 = vld [vmem:[%s3] sm:$0xff]
        %v681 = vld [vmem:[%s3 + $0x8] sm:$0xff]
        %683 = vset.pattern.permute.xlu0 0
        %684 = vperm.xlu0 %683, %v664
        %v685 = vpop.permute.xlu0 %684
        %688 = vset.pattern.permute.xlu0 0
        %689 = vperm.xlu0 %688, %v665
        %v690 = vpop.permute.xlu0 %689
        %693 = vset.pattern.permute.xlu0 0
        %694 = vperm.xlu0 %693, %v666
        %v695 = vpop.permute.xlu0 %694
        %698 = vset.pattern.permute.xlu0 0
        %699 = vperm.xlu0 %698, %v667
        %v700 = vpop.permute.xlu0 %699
        %703 = vset.pattern.permute.xlu0 0
        %704 = vperm.xlu0 %703, %v668
        %v705 = vpop.permute.xlu0 %704
        %708 = vset.pattern.permute.xlu0 0
        %709 = vperm.xlu0 %708, %v669
        %v710 = vpop.permute.xlu0 %709
        %713 = vset.pattern.permute.xlu0 0
        %714 = vperm.xlu0 %713, %v670
        %v715 = vpop.permute.xlu0 %714
        %718 = vset.pattern.permute.xlu0 0
        %719 = vperm.xlu0 %718, %v671
        %v720 = vpop.permute.xlu0 %719
        %723 = vset.pattern.permute.xlu0 0
        %724 = vperm.xlu0 %723, %v672
        %v725 = vpop.permute.xlu0 %724
        %728 = vset.pattern.permute.xlu0 0
        %729 = vperm.xlu0 %728, %v673
        %v730 = vpop.permute.xlu0 %729
        %733 = vset.pattern.permute.xlu0 0
        %734 = vperm.xlu0 %733, %v674
        %v735 = vpop.permute.xlu0 %734
        %738 = vset.pattern.permute.xlu0 0
        %739 = vperm.xlu0 %738, %v675
        %v740 = vpop.permute.xlu0 %739
        %743 = vset.pattern.permute.xlu0 0
        %744 = vperm.xlu0 %743, %v676
        %v745 = vpop.permute.xlu0 %744
        %748 = vset.pattern.permute.xlu0 0
        %749 = vperm.xlu0 %748, %v677
        %v750 = vpop.permute.xlu0 %749
        %753 = vset.pattern.permute.xlu0 0
        %754 = vperm.xlu0 %753, %v678
        %v755 = vpop.permute.xlu0 %754
        %758 = vset.pattern.permute.xlu0 0
        %759 = vperm.xlu0 %758, %v679
        %v760 = vpop.permute.xlu0 %759
        %v762 = vperm.slane %v680, 0
        %v763 = vsub.f32 %v685, %v762
        %v764 = vsub.f32 %v690, %v762
        %v765 = vsub.f32 %v695, %v762
        %v766 = vsub.f32 %v700, %v762
        %v767 = vsub.f32 %v705, %v762
        %v768 = vsub.f32 %v710, %v762
        %v769 = vsub.f32 %v715, %v762
        %v770 = vsub.f32 %v720, %v762
        %v771 = vsub.f32 %v725, %v762
        %v772 = vsub.f32 %v730, %v762
        %v773 = vsub.f32 %v735, %v762
        %v774 = vsub.f32 %v740, %v762
        %v775 = vsub.f32 %v745, %v762
        %v776 = vsub.f32 %v750, %v762
        %v777 = vsub.f32 %v755, %v762
        %v778 = vsub.f32 %v760, %v762
        %v779 = vand.u32 2147483647, %v763
        %v780 = vand.u32 2147483647, %v764
        %v781 = vand.u32 2147483647, %v765
        %v782 = vand.u32 2147483647, %v766
        %v783 = vand.u32 2147483647, %v767
        %v784 = vand.u32 2147483647, %v768
        %v785 = vand.u32 2147483647, %v769
        %v786 = vand.u32 2147483647, %v770
        %v787 = vand.u32 2147483647, %v771
        %v788 = vand.u32 2147483647, %v772
        %v789 = vand.u32 2147483647, %v773
        %v790 = vand.u32 2147483647, %v774
        %v791 = vand.u32 2147483647, %v775
        %v792 = vand.u32 2147483647, %v776
        %v793 = vand.u32 2147483647, %v777
        %v794 = vand.u32 2147483647, %v778
        %795 = vset.pattern.permute.xlu0 1
        %796 = vperm.xlu0 %795, %v664
        %v797 = vpop.permute.xlu0 %796
        %799 = vset.pattern.permute.xlu0 1
        %800 = vperm.xlu0 %799, %v665
        %v801 = vpop.permute.xlu0 %800
        %803 = vset.pattern.permute.xlu0 1
        %804 = vperm.xlu0 %803, %v666
        %v805 = vpop.permute.xlu0 %804
        %807 = vset.pattern.permute.xlu0 1
        %808 = vperm.xlu0 %807, %v667
        %v809 = vpop.permute.xlu0 %808
        %811 = vset.pattern.permute.xlu0 1
        %812 = vperm.xlu0 %811, %v668
        %v813 = vpop.permute.xlu0 %812
        %815 = vset.pattern.permute.xlu0 1
        %816 = vperm.xlu0 %815, %v669
        %v817 = vpop.permute.xlu0 %816
        %819 = vset.pattern.permute.xlu0 1
        %820 = vperm.xlu0 %819, %v670
        %v821 = vpop.permute.xlu0 %820
        %823 = vset.pattern.permute.xlu0 1
        %824 = vperm.xlu0 %823, %v671
        %v825 = vpop.permute.xlu0 %824
        %827 = vset.pattern.permute.xlu0 1
        %828 = vperm.xlu0 %827, %v672
        %v829 = vpop.permute.xlu0 %828
        %831 = vset.pattern.permute.xlu0 1
        %832 = vperm.xlu0 %831, %v673
        %v833 = vpop.permute.xlu0 %832
        %835 = vset.pattern.permute.xlu0 1
        %836 = vperm.xlu0 %835, %v674
        %v837 = vpop.permute.xlu0 %836
        %839 = vset.pattern.permute.xlu0 1
        %840 = vperm.xlu0 %839, %v675
        %v841 = vpop.permute.xlu0 %840
        %843 = vset.pattern.permute.xlu0 1
        %844 = vperm.xlu0 %843, %v676
        %v845 = vpop.permute.xlu0 %844
        %847 = vset.pattern.permute.xlu0 1
        %848 = vperm.xlu0 %847, %v677
        %v849 = vpop.permute.xlu0 %848
        %851 = vset.pattern.permute.xlu0 1
        %852 = vperm.xlu0 %851, %v678
        %v853 = vpop.permute.xlu0 %852
        %855 = vset.pattern.permute.xlu0 1
        %856 = vperm.xlu0 %855, %v679
        %v857 = vpop.permute.xlu0 %856
        %v859 = vperm.slane %v680, 1
        %v860 = vsub.f32 %v797, %v859
        %v861 = vsub.f32 %v801, %v859
        %v862 = vsub.f32 %v805, %v859
        %v863 = vsub.f32 %v809, %v859
        %v864 = vsub.f32 %v813, %v859
        %v865 = vsub.f32 %v817, %v859
        %v866 = vsub.f32 %v821, %v859
        %v867 = vsub.f32 %v825, %v859
        %v868 = vsub.f32 %v829, %v859
        %v869 = vsub.f32 %v833, %v859
        %v870 = vsub.f32 %v837, %v859
        %v871 = vsub.f32 %v841, %v859
        %v872 = vsub.f32 %v845, %v859
        %v873 = vsub.f32 %v849, %v859
        %v874 = vsub.f32 %v853, %v859
        %v875 = vsub.f32 %v857, %v859
        %v876 = vand.u32 2147483647, %v860
        %v877 = vand.u32 2147483647, %v861
        %v878 = vand.u32 2147483647, %v862
        %v879 = vand.u32 2147483647, %v863
        %v880 = vand.u32 2147483647, %v864
        %v881 = vand.u32 2147483647, %v865
        %v882 = vand.u32 2147483647, %v866
        %v883 = vand.u32 2147483647, %v867
        %v884 = vand.u32 2147483647, %v868
        %v885 = vand.u32 2147483647, %v869
        %v886 = vand.u32 2147483647, %v870
        %v887 = vand.u32 2147483647, %v871
        %v888 = vand.u32 2147483647, %v872
        %v889 = vand.u32 2147483647, %v873
        %v890 = vand.u32 2147483647, %v874
        %v891 = vand.u32 2147483647, %v875
        %v892 = vadd.f32 %v779, %v876
        %v893 = vadd.f32 %v780, %v877
        %v894 = vadd.f32 %v781, %v878
        %v895 = vadd.f32 %v782, %v879
        %v896 = vadd.f32 %v783, %v880
        %v897 = vadd.f32 %v784, %v881
        %v898 = vadd.f32 %v785, %v882
        %v899 = vadd.f32 %v786, %v883
        %v900 = vadd.f32 %v787, %v884
        %v901 = vadd.f32 %v788, %v885
        %v902 = vadd.f32 %v789, %v886
        %v903 = vadd.f32 %v790, %v887
        %v904 = vadd.f32 %v791, %v888
        %v905 = vadd.f32 %v792, %v889
        %v906 = vadd.f32 %v793, %v890
        %v907 = vadd.f32 %v794, %v891
        %908 = vset.pattern.permute.xlu0 2
        %909 = vperm.xlu0 %908, %v664
        %v910 = vpop.permute.xlu0 %909
        %912 = vset.pattern.permute.xlu0 2
        %913 = vperm.xlu0 %912, %v665
        %v914 = vpop.permute.xlu0 %913
        %916 = vset.pattern.permute.xlu0 2
        %917 = vperm.xlu0 %916, %v666
        %v918 = vpop.permute.xlu0 %917
        %920 = vset.pattern.permute.xlu0 2
        %921 = vperm.xlu0 %920, %v667
        %v922 = vpop.permute.xlu0 %921
        %924 = vset.pattern.permute.xlu0 2
        %925 = vperm.xlu0 %924, %v668
        %v926 = vpop.permute.xlu0 %925
        %928 = vset.pattern.permute.xlu0 2
        %929 = vperm.xlu0 %928, %v669
        %v930 = vpop.permute.xlu0 %929
        %932 = vset.pattern.permute.xlu0 2
        %933 = vperm.xlu0 %932, %v670
        %v934 = vpop.permute.xlu0 %933
        %936 = vset.pattern.permute.xlu0 2
        %937 = vperm.xlu0 %936, %v671
        %v938 = vpop.permute.xlu0 %937
        %940 = vset.pattern.permute.xlu0 2
        %941 = vperm.xlu0 %940, %v672
        %v942 = vpop.permute.xlu0 %941
        %944 = vset.pattern.permute.xlu0 2
        %945 = vperm.xlu0 %944, %v673
        %v946 = vpop.permute.xlu0 %945
        %948 = vset.pattern.permute.xlu0 2
        %949 = vperm.xlu0 %948, %v674
        %v950 = vpop.permute.xlu0 %949
        %952 = vset.pattern.permute.xlu0 2
        %953 = vperm.xlu0 %952, %v675
        %v954 = vpop.permute.xlu0 %953
        %956 = vset.pattern.permute.xlu0 2
        %957 = vperm.xlu0 %956, %v676
        %v958 = vpop.permute.xlu0 %957
        %960 = vset.pattern.permute.xlu0 2
        %961 = vperm.xlu0 %960, %v677
        %v962 = vpop.permute.xlu0 %961
        %964 = vset.pattern.permute.xlu0 2
        %965 = vperm.xlu0 %964, %v678
        %v966 = vpop.permute.xlu0 %965
        %968 = vset.pattern.permute.xlu0 2
        %969 = vperm.xlu0 %968, %v679
        %v970 = vpop.permute.xlu0 %969
        %v972 = vperm.slane %v680, 2
        %v973 = vsub.f32 %v910, %v972
        %v974 = vsub.f32 %v914, %v972
        %v975 = vsub.f32 %v918, %v972
        %v976 = vsub.f32 %v922, %v972
        %v977 = vsub.f32 %v926, %v972
        %v978 = vsub.f32 %v930, %v972
        %v979 = vsub.f32 %v934, %v972
        %v980 = vsub.f32 %v938, %v972
        %v981 = vsub.f32 %v942, %v972
        %v982 = vsub.f32 %v946, %v972
        %v983 = vsub.f32 %v950, %v972
        %v984 = vsub.f32 %v954, %v972
        %v985 = vsub.f32 %v958, %v972
        %v986 = vsub.f32 %v962, %v972
        %v987 = vsub.f32 %v966, %v972
        %v988 = vsub.f32 %v970, %v972
        %v989 = vand.u32 2147483647, %v973
        %v990 = vand.u32 2147483647, %v974
        %v991 = vand.u32 2147483647, %v975
        %v992 = vand.u32 2147483647, %v976
        %v993 = vand.u32 2147483647, %v977
        %v994 = vand.u32 2147483647, %v978
        %v995 = vand.u32 2147483647, %v979
        %v996 = vand.u32 2147483647, %v980
        %v997 = vand.u32 2147483647, %v981
        %v998 = vand.u32 2147483647, %v982
        %v999 = vand.u32 2147483647, %v983
        %v1000 = vand.u32 2147483647, %v984
        %v1001 = vand.u32 2147483647, %v985
        %v1002 = vand.u32 2147483647, %v986
        %v1003 = vand.u32 2147483647, %v987
        %v1004 = vand.u32 2147483647, %v988
        %v1005 = vadd.f32 %v892, %v989
        %v1006 = vadd.f32 %v893, %v990
        %v1007 = vadd.f32 %v894, %v991
        %v1008 = vadd.f32 %v895, %v992
        %v1009 = vadd.f32 %v896, %v993
        %v1010 = vadd.f32 %v897, %v994
        %v1011 = vadd.f32 %v898, %v995
        %v1012 = vadd.f32 %v899, %v996
        %v1013 = vadd.f32 %v900, %v997
        %v1014 = vadd.f32 %v901, %v998
        %v1015 = vadd.f32 %v902, %v999
        %v1016 = vadd.f32 %v903, %v1000
        %v1017 = vadd.f32 %v904, %v1001
        %v1018 = vadd.f32 %v905, %v1002
        %v1019 = vadd.f32 %v906, %v1003
        %v1020 = vadd.f32 %v907, %v1004
        %1021 = vset.pattern.permute.xlu0 3
        %1022 = vperm.xlu0 %1021, %v664
        %v1023 = vpop.permute.xlu0 %1022
        %1025 = vset.pattern.permute.xlu0 3
        %1026 = vperm.xlu0 %1025, %v665
        %v1027 = vpop.permute.xlu0 %1026
        %1029 = vset.pattern.permute.xlu0 3
        %1030 = vperm.xlu0 %1029, %v666
        %v1031 = vpop.permute.xlu0 %1030
        %1033 = vset.pattern.permute.xlu0 3
        %1034 = vperm.xlu0 %1033, %v667
        %v1035 = vpop.permute.xlu0 %1034
        %1037 = vset.pattern.permute.xlu0 3
        %1038 = vperm.xlu0 %1037, %v668
        %v1039 = vpop.permute.xlu0 %1038
        %1041 = vset.pattern.permute.xlu0 3
        %1042 = vperm.xlu0 %1041, %v669
        %v1043 = vpop.permute.xlu0 %1042
        %1045 = vset.pattern.permute.xlu0 3
        %1046 = vperm.xlu0 %1045, %v670
        %v1047 = vpop.permute.xlu0 %1046
        %1049 = vset.pattern.permute.xlu0 3
        %1050 = vperm.xlu0 %1049, %v671
        %v1051 = vpop.permute.xlu0 %1050
        %1053 = vset.pattern.permute.xlu0 3
        %1054 = vperm.xlu0 %1053, %v672
        %v1055 = vpop.permute.xlu0 %1054
        %1057 = vset.pattern.permute.xlu0 3
        %1058 = vperm.xlu0 %1057, %v673
        %v1059 = vpop.permute.xlu0 %1058
        %1061 = vset.pattern.permute.xlu0 3
        %1062 = vperm.xlu0 %1061, %v674
        %v1063 = vpop.permute.xlu0 %1062
        %1065 = vset.pattern.permute.xlu0 3
        %1066 = vperm.xlu0 %1065, %v675
        %v1067 = vpop.permute.xlu0 %1066
        %1069 = vset.pattern.permute.xlu0 3
        %1070 = vperm.xlu0 %1069, %v676
        %v1071 = vpop.permute.xlu0 %1070
        %1073 = vset.pattern.permute.xlu0 3
        %1074 = vperm.xlu0 %1073, %v677
        %v1075 = vpop.permute.xlu0 %1074
        %1077 = vset.pattern.permute.xlu0 3
        %1078 = vperm.xlu0 %1077, %v678
        %v1079 = vpop.permute.xlu0 %1078
        %1081 = vset.pattern.permute.xlu0 3
        %1082 = vperm.xlu0 %1081, %v679
        %v1083 = vpop.permute.xlu0 %1082
        %v1085 = vperm.slane %v680, 3
        %v1086 = vsub.f32 %v1023, %v1085
        %v1087 = vsub.f32 %v1027, %v1085
        %v1088 = vsub.f32 %v1031, %v1085
        %v1089 = vsub.f32 %v1035, %v1085
        %v1090 = vsub.f32 %v1039, %v1085
        %v1091 = vsub.f32 %v1043, %v1085
        %v1092 = vsub.f32 %v1047, %v1085
        %v1093 = vsub.f32 %v1051, %v1085
        %v1094 = vsub.f32 %v1055, %v1085
        %v1095 = vsub.f32 %v1059, %v1085
        %v1096 = vsub.f32 %v1063, %v1085
        %v1097 = vsub.f32 %v1067, %v1085
        %v1098 = vsub.f32 %v1071, %v1085
        %v1099 = vsub.f32 %v1075, %v1085
        %v1100 = vsub.f32 %v1079, %v1085
        %v1101 = vsub.f32 %v1083, %v1085
        %v1102 = vand.u32 2147483647, %v1086
        %v1103 = vand.u32 2147483647, %v1087
        %v1104 = vand.u32 2147483647, %v1088
        %v1105 = vand.u32 2147483647, %v1089
        %v1106 = vand.u32 2147483647, %v1090
        %v1107 = vand.u32 2147483647, %v1091
        %v1108 = vand.u32 2147483647, %v1092
        %v1109 = vand.u32 2147483647, %v1093
        %v1110 = vand.u32 2147483647, %v1094
        %v1111 = vand.u32 2147483647, %v1095
        %v1112 = vand.u32 2147483647, %v1096
        %v1113 = vand.u32 2147483647, %v1097
        %v1114 = vand.u32 2147483647, %v1098
        %v1115 = vand.u32 2147483647, %v1099
        %v1116 = vand.u32 2147483647, %v1100
        %v1117 = vand.u32 2147483647, %v1101
        %v1118 = vadd.f32 %v1005, %v1102
        %v1119 = vadd.f32 %v1006, %v1103
        %v1120 = vadd.f32 %v1007, %v1104
        %v1121 = vadd.f32 %v1008, %v1105
        %v1122 = vadd.f32 %v1009, %v1106
        %v1123 = vadd.f32 %v1010, %v1107
        %v1124 = vadd.f32 %v1011, %v1108
        %v1125 = vadd.f32 %v1012, %v1109
        %v1126 = vadd.f32 %v1013, %v1110
        %v1127 = vadd.f32 %v1014, %v1111
        %v1128 = vadd.f32 %v1015, %v1112
        %v1129 = vadd.f32 %v1016, %v1113
        %v1130 = vadd.f32 %v1017, %v1114
        %v1131 = vadd.f32 %v1018, %v1115
        %v1132 = vadd.f32 %v1019, %v1116
        %v1133 = vadd.f32 %v1020, %v1117
        %v1135 = vsel %vm259, %v418, 0
        %v1138 = vsel %vm259, %v433, 0
        %v1141 = vsel %vm259, %v448, 0
        %v1144 = vsel %vm259, %v463, 0
        %v1147 = vsel %vm259, %v478, 0
        %v1150 = vsel %vm259, %v493, 0
        %v1153 = vsel %vm259, %v508, 0
        %v1156 = vsel %vm259, %v523, 0
        %v1159 = vsel %vm259, %v538, 0
        %v1162 = vsel %vm259, %v553, 0
        %v1165 = vsel %vm259, %v568, 0
        %v1168 = vsel %vm259, %v583, 0
        %v1171 = vsel %vm259, %v598, 0
        %v1174 = vsel %vm259, %v613, 0
        %v1177 = vsel %vm259, %v628, 0
        %v1180 = vsel %vm259, %v643, 0
        %1182 = vmatpush.msra.mxu0 0.0
        %1183 = vmatpush.msra.mxu0 0.0
        %1184 = vmatpush.msra.mxu0 0.0
        %1185 = vmatpush.msra.mxu0 0.0
        %1186 = vmatpush.msra.mxu0 0.0
        %1187 = vmatpush.msra.mxu0 0.0
        %1188 = vmatpush.msra.mxu0 0.0
        %1189 = vmatpush.msra.mxu0 0.0
        %1190 = vmatpush.msra.mxu0 0.0
        %1191 = vmatpush.msra.mxu0 0.0
        %1192 = vmatpush.msra.mxu0 0.0
        %1193 = vmatpush.msra.mxu0 0.0
        %1194 = vmatpush.msra.mxu0 0.0
        %1195 = vmatpush.msra.mxu0 0.0
        %1196 = vmatpush.msra.mxu0 %v645
        %1197 = vmatpush.msra.mxu0 %v644
        %1198 = vmatmul.f32.gmra.mxu0 %v1135
        %v1199 = vpop.f32.mrf.mxu0
        %v1200 = vadd.f32 %v1118, %v1199
        %1201 = vmatmul.f32.gmra.mxu0 %v1138
        %v1202 = vpop.f32.mrf.mxu0
        %v1203 = vadd.f32 %v1119, %v1202
        %1204 = vmatmul.f32.gmra.mxu0 %v1141
        %v1205 = vpop.f32.mrf.mxu0
        %v1206 = vadd.f32 %v1120, %v1205
        %1207 = vmatmul.f32.gmra.mxu0 %v1144
        %v1208 = vpop.f32.mrf.mxu0
        %v1209 = vadd.f32 %v1121, %v1208
        %1210 = vmatmul.f32.gmra.mxu0 %v1147
        %v1211 = vpop.f32.mrf.mxu0
        %v1212 = vadd.f32 %v1122, %v1211
        %1213 = vmatmul.f32.gmra.mxu0 %v1150
        %v1214 = vpop.f32.mrf.mxu0
        %v1215 = vadd.f32 %v1123, %v1214
        %1216 = vmatmul.f32.gmra.mxu0 %v1153
        %v1217 = vpop.f32.mrf.mxu0
        %v1218 = vadd.f32 %v1124, %v1217
        %1219 = vmatmul.f32.gmra.mxu0 %v1156
        %v1220 = vpop.f32.mrf.mxu0
        %v1221 = vadd.f32 %v1125, %v1220
        %1222 = vmatmul.f32.gmra.mxu0 %v1159
        %v1223 = vpop.f32.mrf.mxu0
        %v1224 = vadd.f32 %v1126, %v1223
        %1225 = vmatmul.f32.gmra.mxu0 %v1162
        %v1226 = vpop.f32.mrf.mxu0
        %v1227 = vadd.f32 %v1127, %v1226
        %1228 = vmatmul.f32.gmra.mxu0 %v1165
        %v1229 = vpop.f32.mrf.mxu0
        %v1230 = vadd.f32 %v1128, %v1229
        %1231 = vmatmul.f32.gmra.mxu0 %v1168
        %v1232 = vpop.f32.mrf.mxu0
        %v1233 = vadd.f32 %v1129, %v1232
        %1234 = vmatmul.f32.gmra.mxu0 %v1171
        %v1235 = vpop.f32.mrf.mxu0
        %v1236 = vadd.f32 %v1130, %v1235
        %1237 = vmatmul.f32.gmra.mxu0 %v1174
        %v1238 = vpop.f32.mrf.mxu0
        %v1239 = vadd.f32 %v1131, %v1238
        %1240 = vmatmul.f32.gmra.mxu0 %v1177
        %v1241 = vpop.f32.mrf.mxu0
        %v1242 = vadd.f32 %v1132, %v1241
        %1243 = vmatmul.f32.gmra.mxu0 %v1180
        %v1244 = vpop.f32.mrf.mxu0
        %v1245 = vadd.f32 %v1133, %v1244
        %1246 = vdwg.mxu0
        %1247 = vset.pattern.permute.xlu0 6
        %1248 = vperm.xlu0 %1247, %v664
        %v1249 = vpop.permute.xlu0 %1248
        %1251 = vset.pattern.permute.xlu0 6
        %1252 = vperm.xlu0 %1251, %v665
        %v1253 = vpop.permute.xlu0 %1252
        %1255 = vset.pattern.permute.xlu0 6
        %1256 = vperm.xlu0 %1255, %v666
        %v1257 = vpop.permute.xlu0 %1256
        %1259 = vset.pattern.permute.xlu0 6
        %1260 = vperm.xlu0 %1259, %v667
        %v1261 = vpop.permute.xlu0 %1260
        %1263 = vset.pattern.permute.xlu0 6
        %1264 = vperm.xlu0 %1263, %v668
        %v1265 = vpop.permute.xlu0 %1264
        %1267 = vset.pattern.permute.xlu0 6
        %1268 = vperm.xlu0 %1267, %v669
        %v1269 = vpop.permute.xlu0 %1268
        %1271 = vset.pattern.permute.xlu0 6
        %1272 = vperm.xlu0 %1271, %v670
        %v1273 = vpop.permute.xlu0 %1272
        %1275 = vset.pattern.permute.xlu0 6
        %1276 = vperm.xlu0 %1275, %v671
        %v1277 = vpop.permute.xlu0 %1276
        %1279 = vset.pattern.permute.xlu0 6
        %1280 = vperm.xlu0 %1279, %v672
        %v1281 = vpop.permute.xlu0 %1280
        %1283 = vset.pattern.permute.xlu0 6
        %1284 = vperm.xlu0 %1283, %v673
        %v1285 = vpop.permute.xlu0 %1284
        %1287 = vset.pattern.permute.xlu0 6
        %1288 = vperm.xlu0 %1287, %v674
        %v1289 = vpop.permute.xlu0 %1288
        %1291 = vset.pattern.permute.xlu0 6
        %1292 = vperm.xlu0 %1291, %v675
        %v1293 = vpop.permute.xlu0 %1292
        %1295 = vset.pattern.permute.xlu0 6
        %1296 = vperm.xlu0 %1295, %v676
        %v1297 = vpop.permute.xlu0 %1296
        %1299 = vset.pattern.permute.xlu0 6
        %1300 = vperm.xlu0 %1299, %v677
        %v1301 = vpop.permute.xlu0 %1300
        %1303 = vset.pattern.permute.xlu0 6
        %1304 = vperm.xlu0 %1303, %v678
        %v1305 = vpop.permute.xlu0 %1304
        %1307 = vset.pattern.permute.xlu0 6
        %1308 = vperm.xlu0 %1307, %v679
        %v1309 = vpop.permute.xlu0 %1308
        %v1311 = vperm.slane %v680, 6
        %v1312 = vmin.f32 %v1249, %v1311
        %v1313 = vmin.f32 %v1253, %v1311
        %v1314 = vmin.f32 %v1257, %v1311
        %v1315 = vmin.f32 %v1261, %v1311
        %v1316 = vmin.f32 %v1265, %v1311
        %v1317 = vmin.f32 %v1269, %v1311
        %v1318 = vmin.f32 %v1273, %v1311
        %v1319 = vmin.f32 %v1277, %v1311
        %v1320 = vmin.f32 %v1281, %v1311
        %v1321 = vmin.f32 %v1285, %v1311
        %v1322 = vmin.f32 %v1289, %v1311
        %v1323 = vmin.f32 %v1293, %v1311
        %v1324 = vmin.f32 %v1297, %v1311
        %v1325 = vmin.f32 %v1301, %v1311
        %v1326 = vmin.f32 %v1305, %v1311
        %v1327 = vmin.f32 %v1309, %v1311
        %1328 = vset.pattern.permute.xlu0 4
        %1329 = vperm.xlu0 %1328, %v664
        %v1330 = vpop.permute.xlu0 %1329
        %1332 = vset.pattern.permute.xlu0 4
        %1333 = vperm.xlu0 %1332, %v665
        %v1334 = vpop.permute.xlu0 %1333
        %1336 = vset.pattern.permute.xlu0 4
        %1337 = vperm.xlu0 %1336, %v666
        %v1338 = vpop.permute.xlu0 %1337
        %1340 = vset.pattern.permute.xlu0 4
        %1341 = vperm.xlu0 %1340, %v667
        %v1342 = vpop.permute.xlu0 %1341
        %1344 = vset.pattern.permute.xlu0 4
        %1345 = vperm.xlu0 %1344, %v668
        %v1346 = vpop.permute.xlu0 %1345
        %1348 = vset.pattern.permute.xlu0 4
        %1349 = vperm.xlu0 %1348, %v669
        %v1350 = vpop.permute.xlu0 %1349
        %1352 = vset.pattern.permute.xlu0 4
        %1353 = vperm.xlu0 %1352, %v670
        %v1354 = vpop.permute.xlu0 %1353
        %1356 = vset.pattern.permute.xlu0 4
        %1357 = vperm.xlu0 %1356, %v671
        %v1358 = vpop.permute.xlu0 %1357
        %1360 = vset.pattern.permute.xlu0 4
        %1361 = vperm.xlu0 %1360, %v672
        %v1362 = vpop.permute.xlu0 %1361
        %1364 = vset.pattern.permute.xlu0 4
        %1365 = vperm.xlu0 %1364, %v673
        %v1366 = vpop.permute.xlu0 %1365
        %1368 = vset.pattern.permute.xlu0 4
        %1369 = vperm.xlu0 %1368, %v674
        %v1370 = vpop.permute.xlu0 %1369
        %1372 = vset.pattern.permute.xlu0 4
        %1373 = vperm.xlu0 %1372, %v675
        %v1374 = vpop.permute.xlu0 %1373
        %1376 = vset.pattern.permute.xlu0 4
        %1377 = vperm.xlu0 %1376, %v676
        %v1378 = vpop.permute.xlu0 %1377
        %1380 = vset.pattern.permute.xlu0 4
        %1381 = vperm.xlu0 %1380, %v677
        %v1382 = vpop.permute.xlu0 %1381
        %1384 = vset.pattern.permute.xlu0 4
        %1385 = vperm.xlu0 %1384, %v678
        %v1386 = vpop.permute.xlu0 %1385
        %1388 = vset.pattern.permute.xlu0 4
        %1389 = vperm.xlu0 %1388, %v679
        %v1390 = vpop.permute.xlu0 %1389
        %v1392 = vperm.slane %v680, 4
        %v1393 = vmax.f32 %v1330, %v1392
        %v1394 = vmax.f32 %v1334, %v1392
        %v1395 = vmax.f32 %v1338, %v1392
        %v1396 = vmax.f32 %v1342, %v1392
        %v1397 = vmax.f32 %v1346, %v1392
        %v1398 = vmax.f32 %v1350, %v1392
        %v1399 = vmax.f32 %v1354, %v1392
        %v1400 = vmax.f32 %v1358, %v1392
        %v1401 = vmax.f32 %v1362, %v1392
        %v1402 = vmax.f32 %v1366, %v1392
        %v1403 = vmax.f32 %v1370, %v1392
        %v1404 = vmax.f32 %v1374, %v1392
        %v1405 = vmax.f32 %v1378, %v1392
        %v1406 = vmax.f32 %v1382, %v1392
        %v1407 = vmax.f32 %v1386, %v1392
        %v1408 = vmax.f32 %v1390, %v1392
        %v1409 = vsub.f32 %v1312, %v1393
        %v1410 = vsub.f32 %v1313, %v1394
        %v1411 = vsub.f32 %v1314, %v1395
        %v1412 = vsub.f32 %v1315, %v1396
        %v1413 = vsub.f32 %v1316, %v1397
        %v1414 = vsub.f32 %v1317, %v1398
        %v1415 = vsub.f32 %v1318, %v1399
        %v1416 = vsub.f32 %v1319, %v1400
        %v1417 = vsub.f32 %v1320, %v1401
        %v1418 = vsub.f32 %v1321, %v1402
        %v1419 = vsub.f32 %v1322, %v1403
        %v1420 = vsub.f32 %v1323, %v1404
        %v1421 = vsub.f32 %v1324, %v1405
        %v1422 = vsub.f32 %v1325, %v1406
        %v1423 = vsub.f32 %v1326, %v1407
        %v1424 = vsub.f32 %v1327, %v1408
        %v1425 = vmax.f32 %v1409, 0.0
        %v1426 = vmax.f32 %v1410, 0.0
        %v1427 = vmax.f32 %v1411, 0.0
        %v1428 = vmax.f32 %v1412, 0.0
        %v1429 = vmax.f32 %v1413, 0.0
        %v1430 = vmax.f32 %v1414, 0.0
        %v1431 = vmax.f32 %v1415, 0.0
        %v1432 = vmax.f32 %v1416, 0.0
        %v1433 = vmax.f32 %v1417, 0.0
        %v1434 = vmax.f32 %v1418, 0.0
        %v1435 = vmax.f32 %v1419, 0.0
        %v1436 = vmax.f32 %v1420, 0.0
        %v1437 = vmax.f32 %v1421, 0.0
        %v1438 = vmax.f32 %v1422, 0.0
        %v1439 = vmax.f32 %v1423, 0.0
        %v1440 = vmax.f32 %v1424, 0.0
        %1441 = vset.pattern.permute.xlu0 7
        %1442 = vperm.xlu0 %1441, %v664
        %v1443 = vpop.permute.xlu0 %1442
        %1445 = vset.pattern.permute.xlu0 7
        %1446 = vperm.xlu0 %1445, %v665
        %v1447 = vpop.permute.xlu0 %1446
        %1449 = vset.pattern.permute.xlu0 7
        %1450 = vperm.xlu0 %1449, %v666
        %v1451 = vpop.permute.xlu0 %1450
        %1453 = vset.pattern.permute.xlu0 7
        %1454 = vperm.xlu0 %1453, %v667
        %v1455 = vpop.permute.xlu0 %1454
        %1457 = vset.pattern.permute.xlu0 7
        %1458 = vperm.xlu0 %1457, %v668
        %v1459 = vpop.permute.xlu0 %1458
        %1461 = vset.pattern.permute.xlu0 7
        %1462 = vperm.xlu0 %1461, %v669
        %v1463 = vpop.permute.xlu0 %1462
        %1465 = vset.pattern.permute.xlu0 7
        %1466 = vperm.xlu0 %1465, %v670
        %v1467 = vpop.permute.xlu0 %1466
        %1469 = vset.pattern.permute.xlu0 7
        %1470 = vperm.xlu0 %1469, %v671
        %v1471 = vpop.permute.xlu0 %1470
        %1473 = vset.pattern.permute.xlu0 7
        %1474 = vperm.xlu0 %1473, %v672
        %v1475 = vpop.permute.xlu0 %1474
        %1477 = vset.pattern.permute.xlu0 7
        %1478 = vperm.xlu0 %1477, %v673
        %v1479 = vpop.permute.xlu0 %1478
        %1481 = vset.pattern.permute.xlu0 7
        %1482 = vperm.xlu0 %1481, %v674
        %v1483 = vpop.permute.xlu0 %1482
        %1485 = vset.pattern.permute.xlu0 7
        %1486 = vperm.xlu0 %1485, %v675
        %v1487 = vpop.permute.xlu0 %1486
        %1489 = vset.pattern.permute.xlu0 7
        %1490 = vperm.xlu0 %1489, %v676
        %v1491 = vpop.permute.xlu0 %1490
        %1493 = vset.pattern.permute.xlu0 7
        %1494 = vperm.xlu0 %1493, %v677
        %v1495 = vpop.permute.xlu0 %1494
        %1497 = vset.pattern.permute.xlu0 7
        %1498 = vperm.xlu0 %1497, %v678
        %v1499 = vpop.permute.xlu0 %1498
        %1501 = vset.pattern.permute.xlu0 7
        %1502 = vperm.xlu0 %1501, %v679
        %v1503 = vpop.permute.xlu0 %1502
        %v1505 = vperm.slane %v680, 7
        %v1506 = vmin.f32 %v1443, %v1505
        %v1507 = vmin.f32 %v1447, %v1505
        %v1508 = vmin.f32 %v1451, %v1505
        %v1509 = vmin.f32 %v1455, %v1505
        %v1510 = vmin.f32 %v1459, %v1505
        %v1511 = vmin.f32 %v1463, %v1505
        %v1512 = vmin.f32 %v1467, %v1505
        %v1513 = vmin.f32 %v1471, %v1505
        %v1514 = vmin.f32 %v1475, %v1505
        %v1515 = vmin.f32 %v1479, %v1505
        %v1516 = vmin.f32 %v1483, %v1505
        %v1517 = vmin.f32 %v1487, %v1505
        %v1518 = vmin.f32 %v1491, %v1505
        %v1519 = vmin.f32 %v1495, %v1505
        %v1520 = vmin.f32 %v1499, %v1505
        %v1521 = vmin.f32 %v1503, %v1505
        %1522 = vset.pattern.permute.xlu0 5
        %1523 = vperm.xlu0 %1522, %v664
        %v1524 = vpop.permute.xlu0 %1523
        %1526 = vset.pattern.permute.xlu0 5
        %1527 = vperm.xlu0 %1526, %v665
        %v1528 = vpop.permute.xlu0 %1527
        %1530 = vset.pattern.permute.xlu0 5
        %1531 = vperm.xlu0 %1530, %v666
        %v1532 = vpop.permute.xlu0 %1531
        %1534 = vset.pattern.permute.xlu0 5
        %1535 = vperm.xlu0 %1534, %v667
        %v1536 = vpop.permute.xlu0 %1535
        %1538 = vset.pattern.permute.xlu0 5
        %1539 = vperm.xlu0 %1538, %v668
        %v1540 = vpop.permute.xlu0 %1539
        %1542 = vset.pattern.permute.xlu0 5
        %1543 = vperm.xlu0 %1542, %v669
        %v1544 = vpop.permute.xlu0 %1543
        %1546 = vset.pattern.permute.xlu0 5
        %1547 = vperm.xlu0 %1546, %v670
        %v1548 = vpop.permute.xlu0 %1547
        %1550 = vset.pattern.permute.xlu0 5
        %1551 = vperm.xlu0 %1550, %v671
        %v1552 = vpop.permute.xlu0 %1551
        %1554 = vset.pattern.permute.xlu0 5
        %1555 = vperm.xlu0 %1554, %v672
        %v1556 = vpop.permute.xlu0 %1555
        %1558 = vset.pattern.permute.xlu0 5
        %1559 = vperm.xlu0 %1558, %v673
        %v1560 = vpop.permute.xlu0 %1559
        %1562 = vset.pattern.permute.xlu0 5
        %1563 = vperm.xlu0 %1562, %v674
        %v1564 = vpop.permute.xlu0 %1563
        %1566 = vset.pattern.permute.xlu0 5
        %1567 = vperm.xlu0 %1566, %v675
        %v1568 = vpop.permute.xlu0 %1567
        %1570 = vset.pattern.permute.xlu0 5
        %1571 = vperm.xlu0 %1570, %v676
        %v1572 = vpop.permute.xlu0 %1571
        %1574 = vset.pattern.permute.xlu0 5
        %1575 = vperm.xlu0 %1574, %v677
        %v1576 = vpop.permute.xlu0 %1575
        %1578 = vset.pattern.permute.xlu0 5
        %1579 = vperm.xlu0 %1578, %v678
        %v1580 = vpop.permute.xlu0 %1579
        %1582 = vset.pattern.permute.xlu0 5
        %1583 = vperm.xlu0 %1582, %v679
        %v1584 = vpop.permute.xlu0 %1583
        %v1586 = vperm.slane %v680, 5
        %v1587 = vmax.f32 %v1524, %v1586
        %v1588 = vmax.f32 %v1528, %v1586
        %v1589 = vmax.f32 %v1532, %v1586
        %v1590 = vmax.f32 %v1536, %v1586
        %v1591 = vmax.f32 %v1540, %v1586
        %v1592 = vmax.f32 %v1544, %v1586
        %v1593 = vmax.f32 %v1548, %v1586
        %v1594 = vmax.f32 %v1552, %v1586
        %v1595 = vmax.f32 %v1556, %v1586
        %v1596 = vmax.f32 %v1560, %v1586
        %v1597 = vmax.f32 %v1564, %v1586
        %v1598 = vmax.f32 %v1568, %v1586
        %v1599 = vmax.f32 %v1572, %v1586
        %v1600 = vmax.f32 %v1576, %v1586
        %v1601 = vmax.f32 %v1580, %v1586
        %v1602 = vmax.f32 %v1584, %v1586
        %v1603 = vsub.f32 %v1506, %v1587
        %v1604 = vsub.f32 %v1507, %v1588
        %v1605 = vsub.f32 %v1508, %v1589
        %v1606 = vsub.f32 %v1509, %v1590
        %v1607 = vsub.f32 %v1510, %v1591
        %v1608 = vsub.f32 %v1511, %v1592
        %v1609 = vsub.f32 %v1512, %v1593
        %v1610 = vsub.f32 %v1513, %v1594
        %v1611 = vsub.f32 %v1514, %v1595
        %v1612 = vsub.f32 %v1515, %v1596
        %v1613 = vsub.f32 %v1516, %v1597
        %v1614 = vsub.f32 %v1517, %v1598
        %v1615 = vsub.f32 %v1518, %v1599
        %v1616 = vsub.f32 %v1519, %v1600
        %v1617 = vsub.f32 %v1520, %v1601
        %v1618 = vsub.f32 %v1521, %v1602
        %v1619 = vmax.f32 %v1603, 0.0
        %v1620 = vmax.f32 %v1604, 0.0
        %v1621 = vmax.f32 %v1605, 0.0
        %v1622 = vmax.f32 %v1606, 0.0
        %v1623 = vmax.f32 %v1607, 0.0
        %v1624 = vmax.f32 %v1608, 0.0
        %v1625 = vmax.f32 %v1609, 0.0
        %v1626 = vmax.f32 %v1610, 0.0
        %v1627 = vmax.f32 %v1611, 0.0
        %v1628 = vmax.f32 %v1612, 0.0
        %v1629 = vmax.f32 %v1613, 0.0
        %v1630 = vmax.f32 %v1614, 0.0
        %v1631 = vmax.f32 %v1615, 0.0
        %v1632 = vmax.f32 %v1616, 0.0
        %v1633 = vmax.f32 %v1617, 0.0
        %v1634 = vmax.f32 %v1618, 0.0
        %v1635 = vmul.f32 %v1425, %v1619
        %v1636 = vmul.f32 %v1426, %v1620
        %v1637 = vmul.f32 %v1427, %v1621
        %v1638 = vmul.f32 %v1428, %v1622
        %v1639 = vmul.f32 %v1429, %v1623
        %v1640 = vmul.f32 %v1430, %v1624
        %v1641 = vmul.f32 %v1431, %v1625
        %v1642 = vmul.f32 %v1432, %v1626
        %v1643 = vmul.f32 %v1433, %v1627
        %v1644 = vmul.f32 %v1434, %v1628
        %v1645 = vmul.f32 %v1435, %v1629
        %v1646 = vmul.f32 %v1436, %v1630
        %v1647 = vmul.f32 %v1437, %v1631
        %v1648 = vmul.f32 %v1438, %v1632
        %v1649 = vmul.f32 %v1439, %v1633
        %v1650 = vmul.f32 %v1440, %v1634
        %1651 = vset.pattern.permute.xlu0 8
        %1652 = vperm.xlu0 %1651, %v664
        %v1653 = vpop.permute.xlu0 %1652
        %1655 = vset.pattern.permute.xlu0 8
        %1656 = vperm.xlu0 %1655, %v665
        %v1657 = vpop.permute.xlu0 %1656
        %1659 = vset.pattern.permute.xlu0 8
        %1660 = vperm.xlu0 %1659, %v666
        %v1661 = vpop.permute.xlu0 %1660
        %1663 = vset.pattern.permute.xlu0 8
        %1664 = vperm.xlu0 %1663, %v667
        %v1665 = vpop.permute.xlu0 %1664
        %1667 = vset.pattern.permute.xlu0 8
        %1668 = vperm.xlu0 %1667, %v668
        %v1669 = vpop.permute.xlu0 %1668
        %1671 = vset.pattern.permute.xlu0 8
        %1672 = vperm.xlu0 %1671, %v669
        %v1673 = vpop.permute.xlu0 %1672
        %1675 = vset.pattern.permute.xlu0 8
        %1676 = vperm.xlu0 %1675, %v670
        %v1677 = vpop.permute.xlu0 %1676
        %1679 = vset.pattern.permute.xlu0 8
        %1680 = vperm.xlu0 %1679, %v671
        %v1681 = vpop.permute.xlu0 %1680
        %1683 = vset.pattern.permute.xlu0 8
        %1684 = vperm.xlu0 %1683, %v672
        %v1685 = vpop.permute.xlu0 %1684
        %1687 = vset.pattern.permute.xlu0 8
        %1688 = vperm.xlu0 %1687, %v673
        %v1689 = vpop.permute.xlu0 %1688
        %1691 = vset.pattern.permute.xlu0 8
        %1692 = vperm.xlu0 %1691, %v674
        %v1693 = vpop.permute.xlu0 %1692
        %1695 = vset.pattern.permute.xlu0 8
        %1696 = vperm.xlu0 %1695, %v675
        %v1697 = vpop.permute.xlu0 %1696
        %1699 = vset.pattern.permute.xlu0 8
        %1700 = vperm.xlu0 %1699, %v676
        %v1701 = vpop.permute.xlu0 %1700
        %1703 = vset.pattern.permute.xlu0 8
        %1704 = vperm.xlu0 %1703, %v677
        %v1705 = vpop.permute.xlu0 %1704
        %1707 = vset.pattern.permute.xlu0 8
        %1708 = vperm.xlu0 %1707, %v678
        %v1709 = vpop.permute.xlu0 %1708
        %1711 = vset.pattern.permute.xlu0 8
        %1712 = vperm.xlu0 %1711, %v679
        %v1713 = vpop.permute.xlu0 %1712
        %v1715 = vperm.slane %v681, 0
        %v1716 = vadd.f32 %v1653, %v1715
        %v1717 = vadd.f32 %v1657, %v1715
        %v1718 = vadd.f32 %v1661, %v1715
        %v1719 = vadd.f32 %v1665, %v1715
        %v1720 = vadd.f32 %v1669, %v1715
        %v1721 = vadd.f32 %v1673, %v1715
        %v1722 = vadd.f32 %v1677, %v1715
        %v1723 = vadd.f32 %v1681, %v1715
        %v1724 = vadd.f32 %v1685, %v1715
        %v1725 = vadd.f32 %v1689, %v1715
        %v1726 = vadd.f32 %v1693, %v1715
        %v1727 = vadd.f32 %v1697, %v1715
        %v1728 = vadd.f32 %v1701, %v1715
        %v1729 = vadd.f32 %v1705, %v1715
        %v1730 = vadd.f32 %v1709, %v1715
        %v1731 = vadd.f32 %v1713, %v1715
        %v1732 = vsub.f32 %v1716, %v1635
        %v1733 = vsub.f32 %v1717, %v1636
        %v1734 = vsub.f32 %v1718, %v1637
        %v1735 = vsub.f32 %v1719, %v1638
        %v1736 = vsub.f32 %v1720, %v1639
        %v1737 = vsub.f32 %v1721, %v1640
        %v1738 = vsub.f32 %v1722, %v1641
        %v1739 = vsub.f32 %v1723, %v1642
        %v1740 = vsub.f32 %v1724, %v1643
        %v1741 = vsub.f32 %v1725, %v1644
        %v1742 = vsub.f32 %v1726, %v1645
        %v1743 = vsub.f32 %v1727, %v1646
        %v1744 = vsub.f32 %v1728, %v1647
        %v1745 = vsub.f32 %v1729, %v1648
        %v1746 = vsub.f32 %v1730, %v1649
        %v1747 = vsub.f32 %v1731, %v1650
        %v1748 = vrcp.pop %v1732
        %v1749 = vmul.f32 %v1732, %v1748
        %v1750 = vsub.f32 1.0, %v1749
        %v1751 = vmul.f32 %v1748, %v1750
        %v1752 = vadd.f32 %v1748, %v1751
        %vm1753 = vweird.f32 %v1732
        %vm1754 = vweird.f32 %v1748
        %vm1755 = vmor %vm1753, %vm1754
        %v1756 = vsel %vm1755, %v1748, %v1752
        %v1757 = vand.u32 2147483647, %v1732
        %vm1758 = vcmp.eq.f32.partialorder %v1757, 8.507059e+37
        %v1759 = vand.u32 %v1732, 2147483648
        %v1760 = vor.u32 1.1754944e-38, %v1759
        %v1761 = vsel %vm1758, %v1760, %v1756
        %v1762 = vmul.f32 %v1635, %v1761
        %v1763 = vrcp.pop %v1733
        %v1764 = vmul.f32 %v1733, %v1763
        %v1765 = vsub.f32 1.0, %v1764
        %v1766 = vmul.f32 %v1763, %v1765
        %v1767 = vadd.f32 %v1763, %v1766
        %vm1768 = vweird.f32 %v1733
        %vm1769 = vweird.f32 %v1763
        %vm1770 = vmor %vm1768, %vm1769
        %v1771 = vsel %vm1770, %v1763, %v1767
        %v1772 = vand.u32 2147483647, %v1733
        %vm1773 = vcmp.eq.f32.partialorder %v1772, 8.507059e+37
        %v1774 = vand.u32 %v1733, 2147483648
        %v1775 = vor.u32 1.1754944e-38, %v1774
        %v1776 = vsel %vm1773, %v1775, %v1771
        %v1777 = vmul.f32 %v1636, %v1776
        %v1778 = vrcp.pop %v1734
        %v1779 = vmul.f32 %v1734, %v1778
        %v1780 = vsub.f32 1.0, %v1779
        %v1781 = vmul.f32 %v1778, %v1780
        %v1782 = vadd.f32 %v1778, %v1781
        %vm1783 = vweird.f32 %v1734
        %vm1784 = vweird.f32 %v1778
        %vm1785 = vmor %vm1783, %vm1784
        %v1786 = vsel %vm1785, %v1778, %v1782
        %v1787 = vand.u32 2147483647, %v1734
        %vm1788 = vcmp.eq.f32.partialorder %v1787, 8.507059e+37
        %v1789 = vand.u32 %v1734, 2147483648
        %v1790 = vor.u32 1.1754944e-38, %v1789
        %v1791 = vsel %vm1788, %v1790, %v1786
        %v1792 = vmul.f32 %v1637, %v1791
        %v1793 = vrcp.pop %v1735
        %v1794 = vmul.f32 %v1735, %v1793
        %v1795 = vsub.f32 1.0, %v1794
        %v1796 = vmul.f32 %v1793, %v1795
        %v1797 = vadd.f32 %v1793, %v1796
        %vm1798 = vweird.f32 %v1735
        %vm1799 = vweird.f32 %v1793
        %vm1800 = vmor %vm1798, %vm1799
        %v1801 = vsel %vm1800, %v1793, %v1797
        %v1802 = vand.u32 2147483647, %v1735
        %vm1803 = vcmp.eq.f32.partialorder %v1802, 8.507059e+37
        %v1804 = vand.u32 %v1735, 2147483648
        %v1805 = vor.u32 1.1754944e-38, %v1804
        %v1806 = vsel %vm1803, %v1805, %v1801
        %v1807 = vmul.f32 %v1638, %v1806
        %v1808 = vrcp.pop %v1736
        %v1809 = vmul.f32 %v1736, %v1808
        %v1810 = vsub.f32 1.0, %v1809
        %v1811 = vmul.f32 %v1808, %v1810
        %v1812 = vadd.f32 %v1808, %v1811
        %vm1813 = vweird.f32 %v1736
        %vm1814 = vweird.f32 %v1808
        %vm1815 = vmor %vm1813, %vm1814
        %v1816 = vsel %vm1815, %v1808, %v1812
        %v1817 = vand.u32 2147483647, %v1736
        %vm1818 = vcmp.eq.f32.partialorder %v1817, 8.507059e+37
        %v1819 = vand.u32 %v1736, 2147483648
        %v1820 = vor.u32 1.1754944e-38, %v1819
        %v1821 = vsel %vm1818, %v1820, %v1816
        %v1822 = vmul.f32 %v1639, %v1821
        %v1823 = vrcp.pop %v1737
        %v1824 = vmul.f32 %v1737, %v1823
        %v1825 = vsub.f32 1.0, %v1824
        %v1826 = vmul.f32 %v1823, %v1825
        %v1827 = vadd.f32 %v1823, %v1826
        %vm1828 = vweird.f32 %v1737
        %vm1829 = vweird.f32 %v1823
        %vm1830 = vmor %vm1828, %vm1829
        %v1831 = vsel %vm1830, %v1823, %v1827
        %v1832 = vand.u32 2147483647, %v1737
        %vm1833 = vcmp.eq.f32.partialorder %v1832, 8.507059e+37
        %v1834 = vand.u32 %v1737, 2147483648
        %v1835 = vor.u32 1.1754944e-38, %v1834
        %v1836 = vsel %vm1833, %v1835, %v1831
        %v1837 = vmul.f32 %v1640, %v1836
        %v1838 = vrcp.pop %v1738
        %v1839 = vmul.f32 %v1738, %v1838
        %v1840 = vsub.f32 1.0, %v1839
        %v1841 = vmul.f32 %v1838, %v1840
        %v1842 = vadd.f32 %v1838, %v1841
        %vm1843 = vweird.f32 %v1738
        %vm1844 = vweird.f32 %v1838
        %vm1845 = vmor %vm1843, %vm1844
        %v1846 = vsel %vm1845, %v1838, %v1842
        %v1847 = vand.u32 2147483647, %v1738
        %vm1848 = vcmp.eq.f32.partialorder %v1847, 8.507059e+37
        %v1849 = vand.u32 %v1738, 2147483648
        %v1850 = vor.u32 1.1754944e-38, %v1849
        %v1851 = vsel %vm1848, %v1850, %v1846
        %v1852 = vmul.f32 %v1641, %v1851
        %v1853 = vrcp.pop %v1739
        %v1854 = vmul.f32 %v1739, %v1853
        %v1855 = vsub.f32 1.0, %v1854
        %v1856 = vmul.f32 %v1853, %v1855
        %v1857 = vadd.f32 %v1853, %v1856
        %vm1858 = vweird.f32 %v1739
        %vm1859 = vweird.f32 %v1853
        %vm1860 = vmor %vm1858, %vm1859
        %v1861 = vsel %vm1860, %v1853, %v1857
        %v1862 = vand.u32 2147483647, %v1739
        %vm1863 = vcmp.eq.f32.partialorder %v1862, 8.507059e+37
        %v1864 = vand.u32 %v1739, 2147483648
        %v1865 = vor.u32 1.1754944e-38, %v1864
        %v1866 = vsel %vm1863, %v1865, %v1861
        %v1867 = vmul.f32 %v1642, %v1866
        %v1868 = vrcp.pop %v1740
        %v1869 = vmul.f32 %v1740, %v1868
        %v1870 = vsub.f32 1.0, %v1869
        %v1871 = vmul.f32 %v1868, %v1870
        %v1872 = vadd.f32 %v1868, %v1871
        %vm1873 = vweird.f32 %v1740
        %vm1874 = vweird.f32 %v1868
        %vm1875 = vmor %vm1873, %vm1874
        %v1876 = vsel %vm1875, %v1868, %v1872
        %v1877 = vand.u32 2147483647, %v1740
        %vm1878 = vcmp.eq.f32.partialorder %v1877, 8.507059e+37
        %v1879 = vand.u32 %v1740, 2147483648
        %v1880 = vor.u32 1.1754944e-38, %v1879
        %v1881 = vsel %vm1878, %v1880, %v1876
        %v1882 = vmul.f32 %v1643, %v1881
        %v1883 = vrcp.pop %v1741
        %v1884 = vmul.f32 %v1741, %v1883
        %v1885 = vsub.f32 1.0, %v1884
        %v1886 = vmul.f32 %v1883, %v1885
        %v1887 = vadd.f32 %v1883, %v1886
        %vm1888 = vweird.f32 %v1741
        %vm1889 = vweird.f32 %v1883
        %vm1890 = vmor %vm1888, %vm1889
        %v1891 = vsel %vm1890, %v1883, %v1887
        %v1892 = vand.u32 2147483647, %v1741
        %vm1893 = vcmp.eq.f32.partialorder %v1892, 8.507059e+37
        %v1894 = vand.u32 %v1741, 2147483648
        %v1895 = vor.u32 1.1754944e-38, %v1894
        %v1896 = vsel %vm1893, %v1895, %v1891
        %v1897 = vmul.f32 %v1644, %v1896
        %v1898 = vrcp.pop %v1742
        %v1899 = vmul.f32 %v1742, %v1898
        %v1900 = vsub.f32 1.0, %v1899
        %v1901 = vmul.f32 %v1898, %v1900
        %v1902 = vadd.f32 %v1898, %v1901
        %vm1903 = vweird.f32 %v1742
        %vm1904 = vweird.f32 %v1898
        %vm1905 = vmor %vm1903, %vm1904
        %v1906 = vsel %vm1905, %v1898, %v1902
        %v1907 = vand.u32 2147483647, %v1742
        %vm1908 = vcmp.eq.f32.partialorder %v1907, 8.507059e+37
        %v1909 = vand.u32 %v1742, 2147483648
        %v1910 = vor.u32 1.1754944e-38, %v1909
        %v1911 = vsel %vm1908, %v1910, %v1906
        %v1912 = vmul.f32 %v1645, %v1911
        %v1913 = vrcp.pop %v1743
        %v1914 = vmul.f32 %v1743, %v1913
        %v1915 = vsub.f32 1.0, %v1914
        %v1916 = vmul.f32 %v1913, %v1915
        %v1917 = vadd.f32 %v1913, %v1916
        %vm1918 = vweird.f32 %v1743
        %vm1919 = vweird.f32 %v1913
        %vm1920 = vmor %vm1918, %vm1919
        %v1921 = vsel %vm1920, %v1913, %v1917
        %v1922 = vand.u32 2147483647, %v1743
        %vm1923 = vcmp.eq.f32.partialorder %v1922, 8.507059e+37
        %v1924 = vand.u32 %v1743, 2147483648
        %v1925 = vor.u32 1.1754944e-38, %v1924
        %v1926 = vsel %vm1923, %v1925, %v1921
        %v1927 = vmul.f32 %v1646, %v1926
        %v1928 = vrcp.pop %v1744
        %v1929 = vmul.f32 %v1744, %v1928
        %v1930 = vsub.f32 1.0, %v1929
        %v1931 = vmul.f32 %v1928, %v1930
        %v1932 = vadd.f32 %v1928, %v1931
        %vm1933 = vweird.f32 %v1744
        %vm1934 = vweird.f32 %v1928
        %vm1935 = vmor %vm1933, %vm1934
        %v1936 = vsel %vm1935, %v1928, %v1932
        %v1937 = vand.u32 2147483647, %v1744
        %vm1938 = vcmp.eq.f32.partialorder %v1937, 8.507059e+37
        %v1939 = vand.u32 %v1744, 2147483648
        %v1940 = vor.u32 1.1754944e-38, %v1939
        %v1941 = vsel %vm1938, %v1940, %v1936
        %v1942 = vmul.f32 %v1647, %v1941
        %v1943 = vrcp.pop %v1745
        %v1944 = vmul.f32 %v1745, %v1943
        %v1945 = vsub.f32 1.0, %v1944
        %v1946 = vmul.f32 %v1943, %v1945
        %v1947 = vadd.f32 %v1943, %v1946
        %vm1948 = vweird.f32 %v1745
        %vm1949 = vweird.f32 %v1943
        %vm1950 = vmor %vm1948, %vm1949
        %v1951 = vsel %vm1950, %v1943, %v1947
        %v1952 = vand.u32 2147483647, %v1745
        %vm1953 = vcmp.eq.f32.partialorder %v1952, 8.507059e+37
        %v1954 = vand.u32 %v1745, 2147483648
        %v1955 = vor.u32 1.1754944e-38, %v1954
        %v1956 = vsel %vm1953, %v1955, %v1951
        %v1957 = vmul.f32 %v1648, %v1956
        %v1958 = vrcp.pop %v1746
        %v1959 = vmul.f32 %v1746, %v1958
        %v1960 = vsub.f32 1.0, %v1959
        %v1961 = vmul.f32 %v1958, %v1960
        %v1962 = vadd.f32 %v1958, %v1961
        %vm1963 = vweird.f32 %v1746
        %vm1964 = vweird.f32 %v1958
        %vm1965 = vmor %vm1963, %vm1964
        %v1966 = vsel %vm1965, %v1958, %v1962
        %v1967 = vand.u32 2147483647, %v1746
        %vm1968 = vcmp.eq.f32.partialorder %v1967, 8.507059e+37
        %v1969 = vand.u32 %v1746, 2147483648
        %v1970 = vor.u32 1.1754944e-38, %v1969
        %v1971 = vsel %vm1968, %v1970, %v1966
        %v1972 = vmul.f32 %v1649, %v1971
        %v1973 = vrcp.pop %v1747
        %v1974 = vmul.f32 %v1747, %v1973
        %v1975 = vsub.f32 1.0, %v1974
        %v1976 = vmul.f32 %v1973, %v1975
        %v1977 = vadd.f32 %v1973, %v1976
        %vm1978 = vweird.f32 %v1747
        %vm1979 = vweird.f32 %v1973
        %vm1980 = vmor %vm1978, %vm1979
        %v1981 = vsel %vm1980, %v1973, %v1977
        %v1982 = vand.u32 2147483647, %v1747
        %vm1983 = vcmp.eq.f32.partialorder %v1982, 8.507059e+37
        %v1984 = vand.u32 %v1747, 2147483648
        %v1985 = vor.u32 1.1754944e-38, %v1984
        %v1986 = vsel %vm1983, %v1985, %v1981
        %v1987 = vmul.f32 %v1650, %v1986
        %v1988 = vmax.f32 %v1249, %v1311
        %v1989 = vmax.f32 %v1253, %v1311
        %v1990 = vmax.f32 %v1257, %v1311
        %v1991 = vmax.f32 %v1261, %v1311
        %v1992 = vmax.f32 %v1265, %v1311
        %v1993 = vmax.f32 %v1269, %v1311
        %v1994 = vmax.f32 %v1273, %v1311
        %v1995 = vmax.f32 %v1277, %v1311
        %v1996 = vmax.f32 %v1281, %v1311
        %v1997 = vmax.f32 %v1285, %v1311
        %v1998 = vmax.f32 %v1289, %v1311
        %v1999 = vmax.f32 %v1293, %v1311
        %v2000 = vmax.f32 %v1297, %v1311
        %v2001 = vmax.f32 %v1301, %v1311
        %v2002 = vmax.f32 %v1305, %v1311
        %v2003 = vmax.f32 %v1309, %v1311
        %v2004 = vmin.f32 %v1330, %v1392
        %v2005 = vmin.f32 %v1334, %v1392
        %v2006 = vmin.f32 %v1338, %v1392
        %v2007 = vmin.f32 %v1342, %v1392
        %v2008 = vmin.f32 %v1346, %v1392
        %v2009 = vmin.f32 %v1350, %v1392
        %v2010 = vmin.f32 %v1354, %v1392
        %v2011 = vmin.f32 %v1358, %v1392
        %v2012 = vmin.f32 %v1362, %v1392
        %v2013 = vmin.f32 %v1366, %v1392
        %v2014 = vmin.f32 %v1370, %v1392
        %v2015 = vmin.f32 %v1374, %v1392
        %v2016 = vmin.f32 %v1378, %v1392
        %v2017 = vmin.f32 %v1382, %v1392
        %v2018 = vmin.f32 %v1386, %v1392
        %v2019 = vmin.f32 %v1390, %v1392
        %v2020 = vsub.f32 %v1988, %v2004
        %v2021 = vsub.f32 %v1989, %v2005
        %v2022 = vsub.f32 %v1990, %v2006
        %v2023 = vsub.f32 %v1991, %v2007
        %v2024 = vsub.f32 %v1992, %v2008
        %v2025 = vsub.f32 %v1993, %v2009
        %v2026 = vsub.f32 %v1994, %v2010
        %v2027 = vsub.f32 %v1995, %v2011
        %v2028 = vsub.f32 %v1996, %v2012
        %v2029 = vsub.f32 %v1997, %v2013
        %v2030 = vsub.f32 %v1998, %v2014
        %v2031 = vsub.f32 %v1999, %v2015
        %v2032 = vsub.f32 %v2000, %v2016
        %v2033 = vsub.f32 %v2001, %v2017
        %v2034 = vsub.f32 %v2002, %v2018
        %v2035 = vsub.f32 %v2003, %v2019
        %v2036 = vmax.f32 %v2020, 0.0
        %v2037 = vmax.f32 %v2021, 0.0
        %v2038 = vmax.f32 %v2022, 0.0
        %v2039 = vmax.f32 %v2023, 0.0
        %v2040 = vmax.f32 %v2024, 0.0
        %v2041 = vmax.f32 %v2025, 0.0
        %v2042 = vmax.f32 %v2026, 0.0
        %v2043 = vmax.f32 %v2027, 0.0
        %v2044 = vmax.f32 %v2028, 0.0
        %v2045 = vmax.f32 %v2029, 0.0
        %v2046 = vmax.f32 %v2030, 0.0
        %v2047 = vmax.f32 %v2031, 0.0
        %v2048 = vmax.f32 %v2032, 0.0
        %v2049 = vmax.f32 %v2033, 0.0
        %v2050 = vmax.f32 %v2034, 0.0
        %v2051 = vmax.f32 %v2035, 0.0
        %v2052 = vmax.f32 %v1443, %v1505
        %v2053 = vmax.f32 %v1447, %v1505
        %v2054 = vmax.f32 %v1451, %v1505
        %v2055 = vmax.f32 %v1455, %v1505
        %v2056 = vmax.f32 %v1459, %v1505
        %v2057 = vmax.f32 %v1463, %v1505
        %v2058 = vmax.f32 %v1467, %v1505
        %v2059 = vmax.f32 %v1471, %v1505
        %v2060 = vmax.f32 %v1475, %v1505
        %v2061 = vmax.f32 %v1479, %v1505
        %v2062 = vmax.f32 %v1483, %v1505
        %v2063 = vmax.f32 %v1487, %v1505
        %v2064 = vmax.f32 %v1491, %v1505
        %v2065 = vmax.f32 %v1495, %v1505
        %v2066 = vmax.f32 %v1499, %v1505
        %v2067 = vmax.f32 %v1503, %v1505
        %v2068 = vmin.f32 %v1524, %v1586
        %v2069 = vmin.f32 %v1528, %v1586
        %v2070 = vmin.f32 %v1532, %v1586
        %v2071 = vmin.f32 %v1536, %v1586
        %v2072 = vmin.f32 %v1540, %v1586
        %v2073 = vmin.f32 %v1544, %v1586
        %v2074 = vmin.f32 %v1548, %v1586
        %v2075 = vmin.f32 %v1552, %v1586
        %v2076 = vmin.f32 %v1556, %v1586
        %v2077 = vmin.f32 %v1560, %v1586
        %v2078 = vmin.f32 %v1564, %v1586
        %v2079 = vmin.f32 %v1568, %v1586
        %v2080 = vmin.f32 %v1572, %v1586
        %v2081 = vmin.f32 %v1576, %v1586
        %v2082 = vmin.f32 %v1580, %v1586
        %v2083 = vmin.f32 %v1584, %v1586
        %v2084 = vsub.f32 %v2052, %v2068
        %v2085 = vsub.f32 %v2053, %v2069
        %v2086 = vsub.f32 %v2054, %v2070
        %v2087 = vsub.f32 %v2055, %v2071
        %v2088 = vsub.f32 %v2056, %v2072
        %v2089 = vsub.f32 %v2057, %v2073
        %v2090 = vsub.f32 %v2058, %v2074
        %v2091 = vsub.f32 %v2059, %v2075
        %v2092 = vsub.f32 %v2060, %v2076
        %v2093 = vsub.f32 %v2061, %v2077
        %v2094 = vsub.f32 %v2062, %v2078
        %v2095 = vsub.f32 %v2063, %v2079
        %v2096 = vsub.f32 %v2064, %v2080
        %v2097 = vsub.f32 %v2065, %v2081
        %v2098 = vsub.f32 %v2066, %v2082
        %v2099 = vsub.f32 %v2067, %v2083
        %v2100 = vmax.f32 %v2084, 0.0
        %v2101 = vmax.f32 %v2085, 0.0
        %v2102 = vmax.f32 %v2086, 0.0
        %v2103 = vmax.f32 %v2087, 0.0
        %v2104 = vmax.f32 %v2088, 0.0
        %v2105 = vmax.f32 %v2089, 0.0
        %v2106 = vmax.f32 %v2090, 0.0
        %v2107 = vmax.f32 %v2091, 0.0
        %v2108 = vmax.f32 %v2092, 0.0
        %v2109 = vmax.f32 %v2093, 0.0
        %v2110 = vmax.f32 %v2094, 0.0
        %v2111 = vmax.f32 %v2095, 0.0
        %v2112 = vmax.f32 %v2096, 0.0
        %v2113 = vmax.f32 %v2097, 0.0
        %v2114 = vmax.f32 %v2098, 0.0
        %v2115 = vmax.f32 %v2099, 0.0
        %v2116 = vmul.f32 %v2036, %v2100
        %v2117 = vmul.f32 %v2037, %v2101
        %v2118 = vmul.f32 %v2038, %v2102
        %v2119 = vmul.f32 %v2039, %v2103
        %v2120 = vmul.f32 %v2040, %v2104
        %v2121 = vmul.f32 %v2041, %v2105
        %v2122 = vmul.f32 %v2042, %v2106
        %v2123 = vmul.f32 %v2043, %v2107
        %v2124 = vmul.f32 %v2044, %v2108
        %v2125 = vmul.f32 %v2045, %v2109
        %v2126 = vmul.f32 %v2046, %v2110
        %v2127 = vmul.f32 %v2047, %v2111
        %v2128 = vmul.f32 %v2048, %v2112
        %v2129 = vmul.f32 %v2049, %v2113
        %v2130 = vmul.f32 %v2050, %v2114
        %v2131 = vmul.f32 %v2051, %v2115
        %v2132 = vsub.f32 %v2116, %v1732
        %v2133 = vsub.f32 %v2117, %v1733
        %v2134 = vsub.f32 %v2118, %v1734
        %v2135 = vsub.f32 %v2119, %v1735
        %v2136 = vsub.f32 %v2120, %v1736
        %v2137 = vsub.f32 %v2121, %v1737
        %v2138 = vsub.f32 %v2122, %v1738
        %v2139 = vsub.f32 %v2123, %v1739
        %v2140 = vsub.f32 %v2124, %v1740
        %v2141 = vsub.f32 %v2125, %v1741
        %v2142 = vsub.f32 %v2126, %v1742
        %v2143 = vsub.f32 %v2127, %v1743
        %v2144 = vsub.f32 %v2128, %v1744
        %v2145 = vsub.f32 %v2129, %v1745
        %v2146 = vsub.f32 %v2130, %v1746
        %v2147 = vsub.f32 %v2131, %v1747
        %v2148 = vrcp.pop %v2116
        %v2149 = vmul.f32 %v2116, %v2148
        %v2150 = vsub.f32 1.0, %v2149
        %v2151 = vmul.f32 %v2148, %v2150
        %v2152 = vadd.f32 %v2148, %v2151
        %vm2153 = vweird.f32 %v2116
        %vm2154 = vweird.f32 %v2148
        %vm2155 = vmor %vm2153, %vm2154
        %v2156 = vsel %vm2155, %v2148, %v2152
        %v2157 = vand.u32 2147483647, %v2116
        %vm2158 = vcmp.eq.f32.partialorder %v2157, 8.507059e+37
        %v2159 = vand.u32 %v2116, 2147483648
        %v2160 = vor.u32 1.1754944e-38, %v2159
        %v2161 = vsel %vm2158, %v2160, %v2156
        %v2162 = vmul.f32 %v2132, %v2161
        %v2163 = vrcp.pop %v2117
        %v2164 = vmul.f32 %v2117, %v2163
        %v2165 = vsub.f32 1.0, %v2164
        %v2166 = vmul.f32 %v2163, %v2165
        %v2167 = vadd.f32 %v2163, %v2166
        %vm2168 = vweird.f32 %v2117
        %vm2169 = vweird.f32 %v2163
        %vm2170 = vmor %vm2168, %vm2169
        %v2171 = vsel %vm2170, %v2163, %v2167
        %v2172 = vand.u32 2147483647, %v2117
        %vm2173 = vcmp.eq.f32.partialorder %v2172, 8.507059e+37
        %v2174 = vand.u32 %v2117, 2147483648
        %v2175 = vor.u32 1.1754944e-38, %v2174
        %v2176 = vsel %vm2173, %v2175, %v2171
        %v2177 = vmul.f32 %v2133, %v2176
        %v2178 = vrcp.pop %v2118
        %v2179 = vmul.f32 %v2118, %v2178
        %v2180 = vsub.f32 1.0, %v2179
        %v2181 = vmul.f32 %v2178, %v2180
        %v2182 = vadd.f32 %v2178, %v2181
        %vm2183 = vweird.f32 %v2118
        %vm2184 = vweird.f32 %v2178
        %vm2185 = vmor %vm2183, %vm2184
        %v2186 = vsel %vm2185, %v2178, %v2182
        %v2187 = vand.u32 2147483647, %v2118
        %vm2188 = vcmp.eq.f32.partialorder %v2187, 8.507059e+37
        %v2189 = vand.u32 %v2118, 2147483648
        %v2190 = vor.u32 1.1754944e-38, %v2189
        %v2191 = vsel %vm2188, %v2190, %v2186
        %v2192 = vmul.f32 %v2134, %v2191
        %v2193 = vrcp.pop %v2119
        %v2194 = vmul.f32 %v2119, %v2193
        %v2195 = vsub.f32 1.0, %v2194
        %v2196 = vmul.f32 %v2193, %v2195
        %v2197 = vadd.f32 %v2193, %v2196
        %vm2198 = vweird.f32 %v2119
        %vm2199 = vweird.f32 %v2193
        %vm2200 = vmor %vm2198, %vm2199
        %v2201 = vsel %vm2200, %v2193, %v2197
        %v2202 = vand.u32 2147483647, %v2119
        %vm2203 = vcmp.eq.f32.partialorder %v2202, 8.507059e+37
        %v2204 = vand.u32 %v2119, 2147483648
        %v2205 = vor.u32 1.1754944e-38, %v2204
        %v2206 = vsel %vm2203, %v2205, %v2201
        %v2207 = vmul.f32 %v2135, %v2206
        %v2208 = vrcp.pop %v2120
        %v2209 = vmul.f32 %v2120, %v2208
        %v2210 = vsub.f32 1.0, %v2209
        %v2211 = vmul.f32 %v2208, %v2210
        %v2212 = vadd.f32 %v2208, %v2211
        %vm2213 = vweird.f32 %v2120
        %vm2214 = vweird.f32 %v2208
        %vm2215 = vmor %vm2213, %vm2214
        %v2216 = vsel %vm2215, %v2208, %v2212
        %v2217 = vand.u32 2147483647, %v2120
        %vm2218 = vcmp.eq.f32.partialorder %v2217, 8.507059e+37
        %v2219 = vand.u32 %v2120, 2147483648
        %v2220 = vor.u32 1.1754944e-38, %v2219
        %v2221 = vsel %vm2218, %v2220, %v2216
        %v2222 = vmul.f32 %v2136, %v2221
        %v2223 = vrcp.pop %v2121
        %v2224 = vmul.f32 %v2121, %v2223
        %v2225 = vsub.f32 1.0, %v2224
        %v2226 = vmul.f32 %v2223, %v2225
        %v2227 = vadd.f32 %v2223, %v2226
        %vm2228 = vweird.f32 %v2121
        %vm2229 = vweird.f32 %v2223
        %vm2230 = vmor %vm2228, %vm2229
        %v2231 = vsel %vm2230, %v2223, %v2227
        %v2232 = vand.u32 2147483647, %v2121
        %vm2233 = vcmp.eq.f32.partialorder %v2232, 8.507059e+37
        %v2234 = vand.u32 %v2121, 2147483648
        %v2235 = vor.u32 1.1754944e-38, %v2234
        %v2236 = vsel %vm2233, %v2235, %v2231
        %v2237 = vmul.f32 %v2137, %v2236
        %v2238 = vrcp.pop %v2122
        %v2239 = vmul.f32 %v2122, %v2238
        %v2240 = vsub.f32 1.0, %v2239
        %v2241 = vmul.f32 %v2238, %v2240
        %v2242 = vadd.f32 %v2238, %v2241
        %vm2243 = vweird.f32 %v2122
        %vm2244 = vweird.f32 %v2238
        %vm2245 = vmor %vm2243, %vm2244
        %v2246 = vsel %vm2245, %v2238, %v2242
        %v2247 = vand.u32 2147483647, %v2122
        %vm2248 = vcmp.eq.f32.partialorder %v2247, 8.507059e+37
        %v2249 = vand.u32 %v2122, 2147483648
        %v2250 = vor.u32 1.1754944e-38, %v2249
        %v2251 = vsel %vm2248, %v2250, %v2246
        %v2252 = vmul.f32 %v2138, %v2251
        %v2253 = vrcp.pop %v2123
        %v2254 = vmul.f32 %v2123, %v2253
        %v2255 = vsub.f32 1.0, %v2254
        %v2256 = vmul.f32 %v2253, %v2255
        %v2257 = vadd.f32 %v2253, %v2256
        %vm2258 = vweird.f32 %v2123
        %vm2259 = vweird.f32 %v2253
        %vm2260 = vmor %vm2258, %vm2259
        %v2261 = vsel %vm2260, %v2253, %v2257
        %v2262 = vand.u32 2147483647, %v2123
        %vm2263 = vcmp.eq.f32.partialorder %v2262, 8.507059e+37
        %v2264 = vand.u32 %v2123, 2147483648
        %v2265 = vor.u32 1.1754944e-38, %v2264
        %v2266 = vsel %vm2263, %v2265, %v2261
        %v2267 = vmul.f32 %v2139, %v2266
        %v2268 = vrcp.pop %v2124
        %v2269 = vmul.f32 %v2124, %v2268
        %v2270 = vsub.f32 1.0, %v2269
        %v2271 = vmul.f32 %v2268, %v2270
        %v2272 = vadd.f32 %v2268, %v2271
        %vm2273 = vweird.f32 %v2124
        %vm2274 = vweird.f32 %v2268
        %vm2275 = vmor %vm2273, %vm2274
        %v2276 = vsel %vm2275, %v2268, %v2272
        %v2277 = vand.u32 2147483647, %v2124
        %vm2278 = vcmp.eq.f32.partialorder %v2277, 8.507059e+37
        %v2279 = vand.u32 %v2124, 2147483648
        %v2280 = vor.u32 1.1754944e-38, %v2279
        %v2281 = vsel %vm2278, %v2280, %v2276
        %v2282 = vmul.f32 %v2140, %v2281
        %v2283 = vrcp.pop %v2125
        %v2284 = vmul.f32 %v2125, %v2283
        %v2285 = vsub.f32 1.0, %v2284
        %v2286 = vmul.f32 %v2283, %v2285
        %v2287 = vadd.f32 %v2283, %v2286
        %vm2288 = vweird.f32 %v2125
        %vm2289 = vweird.f32 %v2283
        %vm2290 = vmor %vm2288, %vm2289
        %v2291 = vsel %vm2290, %v2283, %v2287
        %v2292 = vand.u32 2147483647, %v2125
        %vm2293 = vcmp.eq.f32.partialorder %v2292, 8.507059e+37
        %v2294 = vand.u32 %v2125, 2147483648
        %v2295 = vor.u32 1.1754944e-38, %v2294
        %v2296 = vsel %vm2293, %v2295, %v2291
        %v2297 = vmul.f32 %v2141, %v2296
        %v2298 = vrcp.pop %v2126
        %v2299 = vmul.f32 %v2126, %v2298
        %v2300 = vsub.f32 1.0, %v2299
        %v2301 = vmul.f32 %v2298, %v2300
        %v2302 = vadd.f32 %v2298, %v2301
        %vm2303 = vweird.f32 %v2126
        %vm2304 = vweird.f32 %v2298
        %vm2305 = vmor %vm2303, %vm2304
        %v2306 = vsel %vm2305, %v2298, %v2302
        %v2307 = vand.u32 2147483647, %v2126
        %vm2308 = vcmp.eq.f32.partialorder %v2307, 8.507059e+37
        %v2309 = vand.u32 %v2126, 2147483648
        %v2310 = vor.u32 1.1754944e-38, %v2309
        %v2311 = vsel %vm2308, %v2310, %v2306
        %v2312 = vmul.f32 %v2142, %v2311
        %v2313 = vrcp.pop %v2127
        %v2314 = vmul.f32 %v2127, %v2313
        %v2315 = vsub.f32 1.0, %v2314
        %v2316 = vmul.f32 %v2313, %v2315
        %v2317 = vadd.f32 %v2313, %v2316
        %vm2318 = vweird.f32 %v2127
        %vm2319 = vweird.f32 %v2313
        %vm2320 = vmor %vm2318, %vm2319
        %v2321 = vsel %vm2320, %v2313, %v2317
        %v2322 = vand.u32 2147483647, %v2127
        %vm2323 = vcmp.eq.f32.partialorder %v2322, 8.507059e+37
        %v2324 = vand.u32 %v2127, 2147483648
        %v2325 = vor.u32 1.1754944e-38, %v2324
        %v2326 = vsel %vm2323, %v2325, %v2321
        %v2327 = vmul.f32 %v2143, %v2326
        %v2328 = vrcp.pop %v2128
        %v2329 = vmul.f32 %v2128, %v2328
        %v2330 = vsub.f32 1.0, %v2329
        %v2331 = vmul.f32 %v2328, %v2330
        %v2332 = vadd.f32 %v2328, %v2331
        %vm2333 = vweird.f32 %v2128
        %vm2334 = vweird.f32 %v2328
        %vm2335 = vmor %vm2333, %vm2334
        %v2336 = vsel %vm2335, %v2328, %v2332
        %v2337 = vand.u32 2147483647, %v2128
        %vm2338 = vcmp.eq.f32.partialorder %v2337, 8.507059e+37
        %v2339 = vand.u32 %v2128, 2147483648
        %v2340 = vor.u32 1.1754944e-38, %v2339
        %v2341 = vsel %vm2338, %v2340, %v2336
        %v2342 = vmul.f32 %v2144, %v2341
        %v2343 = vrcp.pop %v2129
        %v2344 = vmul.f32 %v2129, %v2343
        %v2345 = vsub.f32 1.0, %v2344
        %v2346 = vmul.f32 %v2343, %v2345
        %v2347 = vadd.f32 %v2343, %v2346
        %vm2348 = vweird.f32 %v2129
        %vm2349 = vweird.f32 %v2343
        %vm2350 = vmor %vm2348, %vm2349
        %v2351 = vsel %vm2350, %v2343, %v2347
        %v2352 = vand.u32 2147483647, %v2129
        %vm2353 = vcmp.eq.f32.partialorder %v2352, 8.507059e+37
        %v2354 = vand.u32 %v2129, 2147483648
        %v2355 = vor.u32 1.1754944e-38, %v2354
        %v2356 = vsel %vm2353, %v2355, %v2351
        %v2357 = vmul.f32 %v2145, %v2356
        %v2358 = vrcp.pop %v2130
        %v2359 = vmul.f32 %v2130, %v2358
        %v2360 = vsub.f32 1.0, %v2359
        %v2361 = vmul.f32 %v2358, %v2360
        %v2362 = vadd.f32 %v2358, %v2361
        %vm2363 = vweird.f32 %v2130
        %vm2364 = vweird.f32 %v2358
        %vm2365 = vmor %vm2363, %vm2364
        %v2366 = vsel %vm2365, %v2358, %v2362
        %v2367 = vand.u32 2147483647, %v2130
        %vm2368 = vcmp.eq.f32.partialorder %v2367, 8.507059e+37
        %v2369 = vand.u32 %v2130, 2147483648
        %v2370 = vor.u32 1.1754944e-38, %v2369
        %v2371 = vsel %vm2368, %v2370, %v2366
        %v2372 = vmul.f32 %v2146, %v2371
        %v2373 = vrcp.pop %v2131
        %v2374 = vmul.f32 %v2131, %v2373
        %v2375 = vsub.f32 1.0, %v2374
        %v2376 = vmul.f32 %v2373, %v2375
        %v2377 = vadd.f32 %v2373, %v2376
        %vm2378 = vweird.f32 %v2131
        %vm2379 = vweird.f32 %v2373
        %vm2380 = vmor %vm2378, %vm2379
        %v2381 = vsel %vm2380, %v2373, %v2377
        %v2382 = vand.u32 2147483647, %v2131
        %vm2383 = vcmp.eq.f32.partialorder %v2382, 8.507059e+37
        %v2384 = vand.u32 %v2131, 2147483648
        %v2385 = vor.u32 1.1754944e-38, %v2384
        %v2386 = vsel %vm2383, %v2385, %v2381
        %v2387 = vmul.f32 %v2147, %v2386
        %v2388 = vsub.f32 %v1762, %v2162
        %v2389 = vsub.f32 %v1777, %v2177
        %v2390 = vsub.f32 %v1792, %v2192
        %v2391 = vsub.f32 %v1807, %v2207
        %v2392 = vsub.f32 %v1822, %v2222
        %v2393 = vsub.f32 %v1837, %v2237
        %v2394 = vsub.f32 %v1852, %v2252
        %v2395 = vsub.f32 %v1867, %v2267
        %v2396 = vsub.f32 %v1882, %v2282
        %v2397 = vsub.f32 %v1897, %v2297
        %v2398 = vsub.f32 %v1912, %v2312
        %v2399 = vsub.f32 %v1927, %v2327
        %v2400 = vsub.f32 %v1942, %v2342
        %v2401 = vsub.f32 %v1957, %v2357
        %v2402 = vsub.f32 %v1972, %v2372
        %v2403 = vsub.f32 %v1987, %v2387
        %v2404 = vsub.f32 %v1200, %v2388
        %v2405 = vsub.f32 %v1203, %v2389
        %v2406 = vsub.f32 %v1206, %v2390
        %v2407 = vsub.f32 %v1209, %v2391
        %v2408 = vsub.f32 %v1212, %v2392
        %v2409 = vsub.f32 %v1215, %v2393
        %v2410 = vsub.f32 %v1218, %v2394
        %v2411 = vsub.f32 %v1221, %v2395
        %v2412 = vsub.f32 %v1224, %v2396
        %v2413 = vsub.f32 %v1227, %v2397
        %v2414 = vsub.f32 %v1230, %v2398
        %v2415 = vsub.f32 %v1233, %v2399
        %v2416 = vsub.f32 %v1236, %v2400
        %v2417 = vsub.f32 %v1239, %v2401
        %v2418 = vsub.f32 %v1242, %v2402
        %v2419 = vsub.f32 %v1245, %v2403
        %2420 = vst [vmem:[%s218] sm:$0xff] %v2404
        %2421 = vst [vmem:[%s218 + $0x8] sm:$0xff] %v2405
        %2422 = vst [vmem:[%s218 + $0x10] sm:$0xff] %v2406
        %2423 = vst [vmem:[%s218 + $0x18] sm:$0xff] %v2407
        %2424 = vst [vmem:[%s218 + $0x20] sm:$0xff] %v2408
        %2425 = vst [vmem:[%s218 + $0x28] sm:$0xff] %v2409
        %2426 = vst [vmem:[%s218 + $0x30] sm:$0xff] %v2410
        %2427 = vst [vmem:[%s218 + $0x38] sm:$0xff] %v2411
        %2428 = vst [vmem:[%s218 + $0x40] sm:$0xff] %v2412
        %2429 = vst [vmem:[%s218 + $0x48] sm:$0xff] %v2413
        %2430 = vst [vmem:[%s218 + $0x50] sm:$0xff] %v2414
        %2431 = vst [vmem:[%s218 + $0x58] sm:$0xff] %v2415
        %2432 = vst [vmem:[%s218 + $0x60] sm:$0xff] %v2416
        %2433 = vst [vmem:[%s218 + $0x68] sm:$0xff] %v2417
        %2434 = vst [vmem:[%s218 + $0x70] sm:$0xff] %v2418
        %2435 = vst [vmem:[%s218 + $0x78] sm:$0xff] %v2419
        %s2436 = sand.u32 %s120, 1
        %s2437 = scalar_lea.sflag [#allocation3], %s2436
        %s2438 = sand.u32 %s120, 1
        %s2439 = smul.addr %s2438, 128
        %s2440 = scalar_lea.vmem [#allocation2], %s2439
        // Predicated region
        $region37: #{tpu_custom_call.1} parent=35 // pred_check
          %p2441 = pneg %p130
        $region38: #{tpu_custom_call.1} parent=35 // pred_check_branch
          %2443 = sbr.rel (%p2441) target = $region40
        $region39: #{tpu_custom_call.1} parent=35 // pred_region
          %s2444 = smul.u32 16, %s18
          %s2445 = ssub.s32 25, %s2444
          %p2446 = scmp.lt.s32.totalorder %s2445, 16
          %s2447 = scalar_select %p2446, %s2445, 16
          %s2448 = smul.u32 8, %s2447
          %s2449 = ssub.s32 128, %s2448
          %s2450 = sshll.u32 %s2449, 4
          %2451 = vsyncadd %s2437, %s2450
          %p2452 = scmp.ne.s32.totalorder 0, %s2448
          %s2453 = smul.addr %s2444, 8
          %s2454 = scalar_lea.hbm %s4, %s2453
          %s2455 = smul.u32 8, %s2447
          %s2456 = sshll.u32 %s2440, 4
          %s2457 = int_to_ptr.vmem [resolvable:$true] %s2456
          %s2458 = sshll.u32 %s2454, 4
          %s2459 = int_to_ptr.hbm [resolvable:$true] %s2458
          %s2460 = sshll.u32 %s2455, 4
          %2464 = dma.vmem_to_hbm [thread:$0]  (%p2452), %s2457, %s2460, %s2459, %s2437, 128, 128, 8
        $region40: #{tpu_custom_call.1} parent=35 // pred_fallthru
          _
      $region36: #{tpu_custom_call.1} parent=5 // pred_fallthru
        _
      %p2465 = scmp.le.s32.totalorder 2, %s13
      // Predicated region
      $region41: #{tpu_custom_call.1} parent=5 // pred_check
        %p2466 = pneg %p2465
      $region42: #{tpu_custom_call.1} parent=5 // pred_check_branch
        %2468 = sbr.rel (%p2466) target = $region44
      $region43: #{tpu_custom_call.1} parent=5 // pred_region
        %s2469 = ssub.s32 %s13, 2
        // Predicated region
        $region45: #{tpu_custom_call.1} parent=43 // pred_check
          %p2470 = pneg %p136
        $region46: #{tpu_custom_call.1} parent=43 // pred_check_branch
          %2472 = sbr.rel (%p2470) target = $region48
        $region47: #{tpu_custom_call.1} parent=43 // pred_region
          %s2473 = sand.u32 %s121, 1
          %s2474 = scalar_lea.sflag [#allocation3], %s2473
          %s2475 = sand.u32 %s121, 1
          %s2476 = smul.addr %s2475, 128
          %s2477 = scalar_lea.vmem [#allocation2], %s2476
          %2479 = dma.done %s2474, 2048
        $region48: #{tpu_custom_call.1} parent=43 // pred_fallthru
          _
      $region44: #{tpu_custom_call.1} parent=5 // pred_fallthru
        _
    $region6: #{tpu_custom_call.1} parent=1 // loop_footer
      %s17 = sadd.s32 1, %s13
    $region7: #{tpu_custom_call.1} parent=1 // loop_footer_branch
      %12 = sbr.rel target = $region3
    $region8: #{tpu_custom_call.1} parent=1 // loop_exit
      _
    %2480 = vsyncpa [#allocation3], 1
    %s2481 = scalar_lea.sflag [#allocation3], 1
    %2482 = vsyncpa %s2481, 1

</llo_original>
